<compile_context>
chip_gen: v7x
topology: tpu7x:2x2x1
jax: 0.10.0
libtpu: 0.0.40
codegen_flags: <defaults>
</compile_context>

<pallas_src>
import functools

import numpy as np

import jax
import jax.numpy as jnp
from jax import lax
from jax.experimental import pallas as pl
from jax.experimental.pallas import tpu as pltpu


def _round_up(x, m):
    return (x + m - 1) // m * m


# ---------------------------------------------------------------------------
# One-time capability probes (cached; run eagerly even under jit).
# ---------------------------------------------------------------------------
_PROBE_SHAPE = (8, 128)


@functools.lru_cache(maxsize=None)
def _shift_mode() -> str:
    """'roll_fwd' (pltpu.roll == jnp.roll), 'roll_rev', or 'concat' fallback."""

    def probe(o_ref):
        v = (lax.broadcasted_iota(jnp.int32, _PROBE_SHAPE, 1)
             + 1000 * lax.broadcasted_iota(jnp.int32, _PROBE_SHAPE, 0))
        o_ref[...] = pltpu.roll(pltpu.roll(v, 1, 1), 3, 0)

    try:
        with jax.ensure_compile_time_eval():
            out = np.asarray(
                pl.pallas_call(
                    probe,
                    out_shape=jax.ShapeDtypeStruct(_PROBE_SHAPE, jnp.int32),
                )())
    except Exception:  # conservative fallback: known-good concat shifts
        return "concat"

    ref = (np.arange(128, dtype=np.int32)[None, :]
           + 1000 * np.arange(8, dtype=np.int32)[:, None])
    if np.array_equal(out, np.roll(np.roll(ref, 1, 1), 3, 0)):
        return "roll_fwd"
    if np.array_equal(out, np.roll(np.roll(ref, -1, 1), -3, 0)):
        return "roll_rev"
    return "concat"


@functools.lru_cache(maxsize=None)
def _single_buffer_ok() -> bool:
    """True iff pipeline_mode=pl.Buffered(1) (single-buffered I/O) works here."""

    def probe(x_ref, o_ref, s_ref):
        s_ref[...] = x_ref[...] * 2.0
        o_ref[...] = s_ref[...]

    try:
        def spec():
            return pl.BlockSpec((None, 8, 128), lambda i: (i, 0, 0),
                                pipeline_mode=pl.Buffered(1))

        with jax.ensure_compile_time_eval():
            x = jnp.ones((2, 8, 128), jnp.float32)
            out = np.asarray(
                pl.pallas_call(
                    probe,
                    out_shape=jax.ShapeDtypeStruct((2, 8, 128), jnp.float32),
                    grid_spec=pltpu.PrefetchScalarGridSpec(
                        num_scalar_prefetch=0, grid=(2,),
                        in_specs=[spec()], out_specs=spec(),
                        scratch_shapes=[pltpu.VMEM((8, 128), jnp.float32)]),
                    compiler_params=pltpu.CompilerParams(
                        dimension_semantics=("arbitrary",)),
                )(x))
        return bool(np.allclose(out, 2.0))
    except Exception:
        return False


def _vmem_capacity_bytes() -> int:
    try:
        cap = int(pltpu.get_tpu_info().vmem_capacity_bytes)
        if cap > 0:
            return cap
    except Exception:
        pass
    return 64 * 1024 * 1024  # conservative: v7x per-TensorCore VMEM


# ---------------------------------------------------------------------------
# Pallas kernel.
# ---------------------------------------------------------------------------
def _skeletonize_kernel(img_ref, out_ref, cur_ref, nxt_ref, skel_ref, *,
                        num_iter, h_valid, w_valid, mode):
    d, hp, wp = img_ref.shape
    f32 = jnp.float32

    # Plane-sized (not volume-sized) boundary-clamp masks, hoisted out of all
    # loops.  Clamping keys on the *valid* extents so padding stays inert.
    h_idx = lax.broadcasted_iota(jnp.int32, (hp, wp), 0)
    w_idx = lax.broadcasted_iota(jnp.int32, (hp, wp), 1)
    h_first, h_last = h_idx == 0, h_idx == h_valid - 1
    w_first, w_last = w_idx == 0, w_idx == w_valid - 1

    def pool1d(p, axis, op):
        """Edge-clamped 3-tap pool of a 2-D plane along sublane/lane axis."""
        n = p.shape[axis]
        first = h_first if axis == 0 else w_first
        last = h_last if axis == 0 else w_last
        valid = h_valid if axis == 0 else w_valid
        if mode == "concat":
            if axis == 0:
                prev = jnp.concatenate([p[0:1, :], p[0:n - 1, :]], axis=0)
                nxt = jnp.concatenate([p[1:n, :], p[n - 1:n, :]], axis=0)
            else:
                prev = jnp.concatenate([p[:, 0:1], p[:, 0:n - 1]], axis=1)
                nxt = jnp.concatenate([p[:, 1:n], p[:, n - 1:n]], axis=1)
            # concat already replicates the array edge; only the valid-edge
            # clamp on the "next" side is still required when padded.
            if valid != n:
                nxt = jnp.where(last, p, nxt)
        else:
            sh = 1 if mode == "roll_fwd" else n - 1
            prev = jnp.where(first, p, pltpu.roll(p, sh, axis))
            nxt = jnp.where(last, p, pltpu.roll(p, n - sh, axis))
        return op(op(prev, p), nxt)

    def one_iter(src, dst):
        """dst <- soft_erode(src);
        skel += relu(delta - skel*delta), delta = relu(src - soft_dilate(dst))
        (== relu(src - soft_open(src)))."""

        # Pass 1: erode, plane by plane (depth pool needs a 1-plane halo).
        def erode_plane(i, c):
            im1 = jnp.maximum(i - 1, 0)
            ip1 = jnp.minimum(i + 1, d - 1)
            pc = src[i]
            dpool = jnp.minimum(jnp.minimum(src[im1], pc), src[ip1])
            dst[i] = jnp.minimum(
                jnp.minimum(dpool, pool1d(pc, 0, jnp.minimum)),
                pool1d(pc, 1, jnp.minimum))
            return c

        lax.fori_loop(0, d, erode_plane, 0)

        # Pass 2: dilate the eroded volume plane-wise and update the skeleton.
        def update_plane(i, c):
            im1 = jnp.maximum(i - 1, 0)
            ip1 = jnp.minimum(i + 1, d - 1)
            m = jnp.maximum(jnp.maximum(dst[im1], dst[i]), dst[ip1])
            m = pool1d(m, 0, jnp.maximum)
            m = pool1d(m, 1, jnp.maximum)
            delta = jnp.maximum(src[i] - m, 0.0)
            sk = skel_ref[i]
            skel_ref[i] = sk + jnp.maximum(delta - sk * delta, 0.0)
            return c

        lax.fori_loop(0, d, update_plane, 0)

    # Load once; all in-loop math is f32 regardless of the I/O dtype.
    skel_ref[...] = jnp.zeros_like(skel_ref)

    def load_plane(i, c):
        cur_ref[i] = img_ref[i].astype(f32)
        return c

    lax.fori_loop(0, d, load_plane, 0)

    # num_iter + 1 uniform iterations: with skel initialised to zero, the
    # first iteration reproduces skel = relu(img - soft_open(img)) exactly,
    # and the erode computed inside soft_open(x) doubles as the next
    # iteration's volume (1 erode + 1 dilate per iteration vs the reference's
    # 2 erodes + 1 dilate), with identical numerics.
    total = num_iter + 1

    def pair_body(_, c):  # static ping-pong: no dynamic buffer-slot indexing
        one_iter(cur_ref, nxt_ref)
        one_iter(nxt_ref, cur_ref)
        return c

    lax.fori_loop(0, total // 2, pair_body, 0)
    if total % 2:
        one_iter(cur_ref, nxt_ref)

    def store_plane(i, c):
        out_ref[i] = skel_ref[i].astype(out_ref.dtype)
        return c

    lax.fori_loop(0, d, store_plane, 0)


# ---------------------------------------------------------------------------
# Wrapper.
# ---------------------------------------------------------------------------
def soft_skeletonize(img, num_iter=40):
    """img: (N, C, D, H, W) probability map -> soft skeleton, same shape/dtype."""
    if img.ndim != 5:
        raise ValueError(
            f"In SoftSkeletonize, len(img.shape) is not equal to 5. "
            f"Got {img.ndim}.")
    n, c, d, h, w = img.shape
    x = img.reshape(n * c, d, h, w)

    # Axis placement: lane axis = minimal round_up(s,128)/s padding ratio,
    # sublane axis = minimal round_up(s,8)/s among the remaining two.
    sizes = (d, h, w)
    lane_ax = min(range(3),
                  key=lambda a: (_round_up(sizes[a], 128) / sizes[a], -sizes[a]))
    rest = [a for a in range(3) if a != lane_ax]
    sub_ax = min(rest,
                 key=lambda a: (_round_up(sizes[a], 8) / sizes[a], -sizes[a]))
    depth_ax = [a for a in rest if a != sub_ax][0]
    perm = (0, depth_ax + 1, sub_ax + 1, lane_ax + 1)
    inv_perm = [0] * 4
    for new_pos, old_pos in enumerate(perm):
        inv_perm[old_pos] = new_pos
    x = jnp.transpose(x, perm)
    dd, hh, ww = x.shape[1], x.shape[2], x.shape[3]

    # Pad sublane/lane dims to hardware tile multiples (pads are inert).
    hp, wp = _round_up(hh, 8), _round_up(ww, 128)
    if (hp, wp) != (hh, ww):
        x = jnp.pad(x, ((0, 0), (0, 0), (0, hp - hh), (0, wp - ww)))

    single_buf = _single_buffer_ok()
    mode = _shift_mode()

    # VMEM budget: 3 resident f32 volumes (ping-pong + skeleton accumulator)
    # + pipelined I/O blocks + slack for plane-sized temporaries, capped at
    # ~80% of this chip's per-core VMEM (128 MiB v5e/v6e, 64 MiB v7x).
    vol_f32 = dd * hp * wp * 4
    vol_io = dd * hp * wp * img.dtype.itemsize
    io_bufs = 1 if single_buf else 2
    working = 3 * vol_f32 + 2 * io_bufs * vol_io + 2 * 1024 * 1024
    budget = int(_vmem_capacity_bytes() * 0.8)
    vmem_limit = int(min(budget, max(32 * 1024 * 1024, working)))
    # TODO(synk): if `working` exceeds `budget` (very large volumes), split
    # num_iter across several pallas_call invocations with a 3*iters_per_call
    # spatial halo instead of whole-volume VMEM residency.
    # TODO(synk): on v7x (2 TensorCores) a call with n*c == 1 feeds only one
    # core; split the sublane axis across cores with a per-iteration halo
    # exchange (VMEM_SHARED/CMEM) to use both.

    spec_kwargs = dict(pipeline_mode=pl.Buffered(1)) if single_buf else {}

    kernel = functools.partial(
        _skeletonize_kernel, num_iter=num_iter, h_valid=hh, w_valid=ww,
        mode=mode)

    out = pl.pallas_call(
        kernel,
        out_shape=jax.ShapeDtypeStruct((n * c, dd, hp, wp), img.dtype),
        grid_spec=pltpu.PrefetchScalarGridSpec(
            num_scalar_prefetch=0,
            grid=(n * c,),
            in_specs=[pl.BlockSpec((None, dd, hp, wp),
                                   lambda i: (i, 0, 0, 0), **spec_kwargs)],
            out_specs=pl.BlockSpec((None, dd, hp, wp),
                                   lambda i: (i, 0, 0, 0), **spec_kwargs),
            scratch_shapes=[pltpu.VMEM((dd, hp, wp), jnp.float32),
                            pltpu.VMEM((dd, hp, wp), jnp.float32),
                            pltpu.VMEM((dd, hp, wp), jnp.float32)],
        ),
        compiler_params=pltpu.CompilerParams(
            dimension_semantics=("parallel",),
            vmem_limit_bytes=vmem_limit,
        ),
    )(x)

    out = out[:, :, :hh, :ww]
    out = jnp.transpose(out, tuple(inv_perm))
    return out.reshape(n, c, d, h, w)


# ---------------------------------------------------------------------------
# Pure-JAX reference (literal transcription of the PyTorch module).
# ---------------------------------------------------------------------------
def _shift_edge_ref(x, axis, off):
    n = x.shape[axis]

    def sl(a, b):
        idx = [slice(None)] * x.ndim
        idx[axis] = slice(a, b)
        return x[tuple(idx)]

    if off == -1:
        return jnp.concatenate([sl(0, 1), sl(0, n - 1)], axis=axis)
    return jnp.concatenate([sl(1, n), sl(n - 1, n)], axis=axis)


def _minpool3_ref(x, ax):
    return jnp.minimum(jnp.minimum(_shift_edge_ref(x, ax, -1), x),
                       _shift_edge_ref(x, ax, 1))


def _maxpool3_ref(x, ax):
    return jnp.maximum(jnp.maximum(_shift_edge_ref(x, ax, -1), x),
                       _shift_edge_ref(x, ax, 1))


def soft_skeletonize_ref(img, num_iter=40):
    def erode(v):
        return jnp.minimum(jnp.minimum(_minpool3_ref(v, 2),
                                       _minpool3_ref(v, 3)),
                           _minpool3_ref(v, 4))

    def dilate(v):
        for ax in (2, 3, 4):
            v = _maxpool3_ref(v, ax)
        return v

    def soft_open(v):
        return dilate(erode(v))

    def relu(v):
        return jnp.maximum(v, 0.0)

    skel = relu(img - soft_open(img))

    def body(_, carry):
        cur, sk = carry
        cur = erode(cur)
        delta = relu(cur - soft_open(cur))
        sk = sk + relu(delta - sk * delta)
        return cur, sk

    _, skel = lax.fori_loop(0, num_iter, body, (img, skel))
    return skel


if __name__ == "__main__":
    # Warm the capability probes outside any jit trace.
    _shift_mode()
    _single_buffer_ok()

    key = jax.random.PRNGKey(0)
    # Small NCDHW probability map; spatial dims chosen so the wrapper
    # exercises the axis permutation and both sublane/lane paddings.
    img = jax.random.uniform(key, (2, 2, 10, 16, 12), dtype=jnp.float32)

    out = jax.jit(functools.partial(soft_skeletonize, num_iter=40))(img)
    out = jax.block_until_ready(out)

    ref = jax.jit(functools.partial(soft_skeletonize_ref, num_iter=40))(img)
    ref = jax.block_until_ready(ref)

    assert out.shape == img.shape and out.dtype == img.dtype
    err = float(jnp.max(jnp.abs(out - ref)))
    assert err < 1e-5, f"max abs err {err}"
    print("KERNEL_OK")
</pallas_src>

<mosaic_0001>
module attributes {stable_mosaic.version = 11 : i64} {
  func.func @probe(%arg0: i32, %arg1: memref<1x8x128xf32, #tpu.memory_space<vmem>>, %arg2: memref<1x8x128xf32, #tpu.memory_space<vmem>>, %arg3: memref<8x128xf32, #tpu.memory_space<vmem>>) attributes {dimension_semantics = [#tpu.dimension_semantics<arbitrary>], iteration_bounds = array<i64: 2>, scalar_prefetch = 0 : i64, scratch_operands = 1 : i64, tpu.core_type = #tpu.core_type<tc>, window_params = [{pipeline_mode = #tpu.pipeline_mode<synchronous>, transform_indices = @transform_0, window_bounds = array<i64: 1, 8, 128>}, {pipeline_mode = #tpu.pipeline_mode<synchronous>, transform_indices = @transform_1, window_bounds = array<i64: 1, 8, 128>}]} {
    %c0 = arith.constant 0 : index
    %c0_0 = arith.constant 0 : index
    %c0_1 = arith.constant 0 : index
    %0 = vector.load %arg1[%c0, %c0_0, %c0_1] : memref<1x8x128xf32, #tpu.memory_space<vmem>>, vector<1x8x128xf32>
    %1 = vector.shape_cast %0 : vector<1x8x128xf32> to vector<8x128xf32>
    %cst = arith.constant 2.000000e+00 : f32
    %2 = vector.broadcast %cst : f32 to vector<8x128xf32>
    %3 = arith.mulf %1, %2 : vector<8x128xf32>
    %c0_2 = arith.constant 0 : index
    %c0_3 = arith.constant 0 : index
    %4 = vector.load %arg3[%c0_2, %c0_3] : memref<8x128xf32, #tpu.memory_space<vmem>>, vector<8x128xf32>
    tpu.vector_store %arg3[%c0_2, %c0_3], %3 {strides = array<i32>} : memref<8x128xf32, #tpu.memory_space<vmem>>, vector<8x128xf32>,
    %c0_4 = arith.constant 0 : index
    %c0_5 = arith.constant 0 : index
    %5 = vector.load %arg3[%c0_4, %c0_5] : memref<8x128xf32, #tpu.memory_space<vmem>>, vector<8x128xf32>
    %c0_6 = arith.constant 0 : index
    %c0_7 = arith.constant 0 : index
    %c0_8 = arith.constant 0 : index
    %6 = vector.load %arg2[%c0_6, %c0_7, %c0_8] : memref<1x8x128xf32, #tpu.memory_space<vmem>>, vector<1x8x128xf32>
    %7 = vector.shape_cast %6 : vector<1x8x128xf32> to vector<8x128xf32>
    %8 = vector.shape_cast %5 : vector<8x128xf32> to vector<1x8x128xf32>
    tpu.vector_store %arg2[%c0_6, %c0_7, %c0_8], %8 {strides = array<i32>} : memref<1x8x128xf32, #tpu.memory_space<vmem>>, vector<1x8x128xf32>,
    return
  }
  func.func @transform_0(%arg0: i32) -> (i32, i32, i32) {
    %c0_i32 = arith.constant 0 : i32
    %c0_i32_0 = arith.constant 0 : i32
    %c0_i32_1 = arith.constant 0 : i32
    return %arg0, %c0_i32, %c0_i32_0 : i32, i32, i32
  }
  func.func @transform_1(%arg0: i32) -> (i32, i32, i32) {
    %c0_i32 = arith.constant 0 : i32
    %c0_i32_0 = arith.constant 0 : i32
    %c0_i32_1 = arith.constant 0 : i32
    return %arg0, %c0_i32, %c0_i32_0 : i32, i32, i32
  }
}

module attributes {stable_mosaic.version = 11 : i64} {
  func.func @_skeletonize_kernel(%arg0: i32, %arg1: memref<1x10x16x128xf32, #tpu.memory_space<vmem>>, %arg2: memref<1x10x16x128xf32, #tpu.memory_space<vmem>>, %arg3: memref<10x16x128xf32, #tpu.memory_space<vmem>>, %arg4: memref<10x16x128xf32, #tpu.memory_space<vmem>>, %arg5: memref<10x16x128xf32, #tpu.memory_space<vmem>>) attributes {dimension_semantics = [#tpu.dimension_semantics<parallel>], iteration_bounds = array<i64: 4>, scalar_prefetch = 0 : i64, scratch_operands = 3 : i64, tpu.core_type = #tpu.core_type<tc>, window_params = [{transform_indices = @transform_0, window_bounds = array<i64: 1, 10, 16, 128>}, {transform_indices = @transform_1, window_bounds = array<i64: 1, 10, 16, 128>}]} {
    %0 = tpu.iota {dimensions = array<i32: 0>} : vector<16x128xi32>
    %1 = tpu.iota {dimensions = array<i32: 1>} : vector<16x128xi32>
    %c11_i32 = arith.constant 11 : i32
    %2 = vector.broadcast %c11_i32 : i32 to vector<16x128xi32>
    %3 = arith.cmpi eq, %0, %2 : vector<16x128xi32>
    %c15_i32 = arith.constant 15 : i32
    %4 = vector.broadcast %c15_i32 : i32 to vector<16x128xi32>
    %5 = arith.cmpi eq, %1, %4 : vector<16x128xi32>
    %cst = arith.constant 0.000000e+00 : f32
    %6 = vector.broadcast %cst : f32 to vector<10x16x128xf32>
    %c0 = arith.constant 0 : index
    %c0_0 = arith.constant 0 : index
    %c0_1 = arith.constant 0 : index
    %7 = vector.load %arg5[%c0, %c0_0, %c0_1] : memref<10x16x128xf32, #tpu.memory_space<vmem>>, vector<10x16x128xf32>
    tpu.vector_store %arg5[%c0, %c0_0, %c0_1], %6 {strides = array<i32>} : memref<10x16x128xf32, #tpu.memory_space<vmem>>, vector<10x16x128xf32>,
    %c0_i32 = arith.constant 0 : i32
    %c10_i32 = arith.constant 10 : i32
    %8 = arith.addi %c0_i32, %c10_i32 : i32
    %c1_i32 = arith.constant 1 : i32
    scf.for %arg6 = %c0_i32 to %8 step %c1_i32  : i32 {
      %c0_17 = arith.constant 0 : index
      %13 = arith.index_cast %arg6 : i32 to index
      %c0_18 = arith.constant 0 : index
      %c0_19 = arith.constant 0 : index
      %14 = vector.load %arg1[%c0_17, %13, %c0_18, %c0_19] : memref<1x10x16x128xf32, #tpu.memory_space<vmem>>, vector<1x1x16x128xf32>
      %15 = vector.shape_cast %14 : vector<1x1x16x128xf32> to vector<16x128xf32>
      %16 = arith.index_cast %arg6 : i32 to index
      %c0_20 = arith.constant 0 : index
      %c0_21 = arith.constant 0 : index
      %17 = vector.load %arg3[%16, %c0_20, %c0_21] : memref<10x16x128xf32, #tpu.memory_space<vmem>>, vector<1x16x128xf32>
      %18 = vector.shape_cast %17 : vector<1x16x128xf32> to vector<16x128xf32>
      %19 = vector.shape_cast %15 : vector<16x128xf32> to vector<1x16x128xf32>
      tpu.vector_store %arg3[%16, %c0_20, %c0_21], %19 {strides = array<i32>} : memref<10x16x128xf32, #tpu.memory_space<vmem>>, vector<1x16x128xf32>,
    }
    %c10_i32_2 = arith.constant 10 : i32
    %c0_i32_3 = arith.constant 0 : i32
    %c20_i32 = arith.constant 20 : i32
    %9 = arith.addi %c0_i32_3, %c20_i32 : i32
    %c1_i32_4 = arith.constant 1 : i32
    scf.for %arg6 = %c0_i32_3 to %9 step %c1_i32_4  : i32 {
      %c0_i32_17 = arith.constant 0 : i32
      %c10_i32_18 = arith.constant 10 : i32
      %13 = arith.addi %c0_i32_17, %c10_i32_18 : i32
      %c1_i32_19 = arith.constant 1 : i32
      scf.for %arg7 = %c0_i32_17 to %13 step %c1_i32_19  : i32 {
        %c1_i32_33 = arith.constant 1 : i32
        %17 = arith.subi %arg7, %c1_i32_33 : i32
        %c0_i32_34 = arith.constant 0 : i32
        %18 = arith.maxsi %17, %c0_i32_34 : i32
        %c1_i32_35 = arith.constant 1 : i32
        %19 = arith.addi %arg7, %c1_i32_35 : i32
        %c9_i32 = arith.constant 9 : i32
        %20 = arith.minsi %19, %c9_i32 : i32
        %21 = arith.index_cast %arg7 : i32 to index
        %c0_36 = arith.constant 0 : index
        %c0_37 = arith.constant 0 : index
        %22 = vector.load %arg3[%21, %c0_36, %c0_37] : memref<10x16x128xf32, #tpu.memory_space<vmem>>, vector<1x16x128xf32>
        %23 = vector.shape_cast %22 : vector<1x16x128xf32> to vector<16x128xf32>
        %24 = arith.index_cast %18 : i32 to index
        %c0_38 = arith.constant 0 : index
        %c0_39 = arith.constant 0 : index
        %25 = vector.load %arg3[%24, %c0_38, %c0_39] : memref<10x16x128xf32, #tpu.memory_space<vmem>>, vector<1x16x128xf32>
        %26 = vector.shape_cast %25 : vector<1x16x128xf32> to vector<16x128xf32>
        %27 = arith.minimumf %26, %23 : vector<16x128xf32>
        %28 = arith.index_cast %20 : i32 to index
        %c0_40 = arith.constant 0 : index
        %c0_41 = arith.constant 0 : index
        %29 = vector.load %arg3[%28, %c0_40, %c0_41] : memref<10x16x128xf32, #tpu.memory_space<vmem>>, vector<1x16x128xf32>
        %30 = vector.shape_cast %29 : vector<1x16x128xf32> to vector<16x128xf32>
        %31 = arith.minimumf %27, %30 : vector<16x128xf32>
        %32 = vector.extract_strided_slice %23 {offsets = [0, 0], sizes = [1, 128], strides = [1, 1]} : vector<16x128xf32> to vector<1x128xf32>
        %33 = vector.extract_strided_slice %23 {offsets = [0, 0], sizes = [15, 128], strides = [1, 1]} : vector<16x128xf32> to vector<15x128xf32>
        %34 = tpu.concatenate %32, %33 in 0 : vector<1x128xf32>, vector<15x128xf32> -> vector<16x128xf32>
        %35 = vector.extract_strided_slice %23 {offsets = [1, 0], sizes = [15, 128], strides = [1, 1]} : vector<16x128xf32> to vector<15x128xf32>
        %36 = vector.extract_strided_slice %23 {offsets = [15, 0], sizes = [1, 128], strides = [1, 1]} : vector<16x128xf32> to vector<1x128xf32>
        %37 = tpu.concatenate %35, %36 in 0 : vector<15x128xf32>, vector<1x128xf32> -> vector<16x128xf32>
        %38 = arith.select %3, %23, %37 : vector<16x128xi1>, vector<16x128xf32>
        %39 = arith.minimumf %34, %23 : vector<16x128xf32>
        %40 = arith.minimumf %39, %38 : vector<16x128xf32>
        %41 = arith.minimumf %31, %40 : vector<16x128xf32>
        %42 = vector.extract_strided_slice %23 {offsets = [0, 0], sizes = [16, 1], strides = [1, 1]} : vector<16x128xf32> to vector<16x1xf32>
        %43 = vector.extract_strided_slice %23 {offsets = [0, 0], sizes = [16, 127], strides = [1, 1]} : vector<16x128xf32> to vector<16x127xf32>
        %44 = tpu.concatenate %42, %43 in 1 : vector<16x1xf32>, vector<16x127xf32> -> vector<16x128xf32>
        %45 = vector.extract_strided_slice %23 {offsets = [0, 1], sizes = [16, 127], strides = [1, 1]} : vector<16x128xf32> to vector<16x127xf32>
        %46 = vector.extract_strided_slice %23 {offsets = [0, 127], sizes = [16, 1], strides = [1, 1]} : vector<16x128xf32> to vector<16x1xf32>
        %47 = tpu.concatenate %45, %46 in 1 : vector<16x127xf32>, vector<16x1xf32> -> vector<16x128xf32>
        %48 = arith.select %5, %23, %47 : vector<16x128xi1>, vector<16x128xf32>
        %49 = arith.minimumf %44, %23 : vector<16x128xf32>
        %50 = arith.minimumf %49, %48 : vector<16x128xf32>
        %51 = arith.minimumf %41, %50 : vector<16x128xf32>
        %52 = arith.index_cast %arg7 : i32 to index
        %c0_42 = arith.constant 0 : index
        %c0_43 = arith.constant 0 : index
        %53 = vector.load %arg4[%52, %c0_42, %c0_43] : memref<10x16x128xf32, #tpu.memory_space<vmem>>, vector<1x16x128xf32>
        %54 = vector.shape_cast %53 : vector<1x16x128xf32> to vector<16x128xf32>
        %55 = vector.shape_cast %51 : vector<16x128xf32> to vector<1x16x128xf32>
        tpu.vector_store %arg4[%52, %c0_42, %c0_43], %55 {strides = array<i32>} : memref<10x16x128xf32, #tpu.memory_space<vmem>>, vector<1x16x128xf32>,
      }
      %c10_i32_20 = arith.constant 10 : i32
      %c0_i32_21 = arith.constant 0 : i32
      %c10_i32_22 = arith.constant 10 : i32
      %14 = arith.addi %c0_i32_21, %c10_i32_22 : i32
      %c1_i32_23 = arith.constant 1 : i32
      scf.for %arg7 = %c0_i32_21 to %14 step %c1_i32_23  : i32 {
        %c1_i32_33 = arith.constant 1 : i32
        %17 = arith.subi %arg7, %c1_i32_33 : i32
        %c0_i32_34 = arith.constant 0 : i32
        %18 = arith.maxsi %17, %c0_i32_34 : i32
        %c1_i32_35 = arith.constant 1 : i32
        %19 = arith.addi %arg7, %c1_i32_35 : i32
        %c9_i32 = arith.constant 9 : i32
        %20 = arith.minsi %19, %c9_i32 : i32
        %21 = arith.index_cast %18 : i32 to index
        %c0_36 = arith.constant 0 : index
        %c0_37 = arith.constant 0 : index
        %22 = vector.load %arg4[%21, %c0_36, %c0_37] : memref<10x16x128xf32, #tpu.memory_space<vmem>>, vector<1x16x128xf32>
        %23 = vector.shape_cast %22 : vector<1x16x128xf32> to vector<16x128xf32>
        %24 = arith.index_cast %arg7 : i32 to index
        %c0_38 = arith.constant 0 : index
        %c0_39 = arith.constant 0 : index
        %25 = vector.load %arg4[%24, %c0_38, %c0_39] : memref<10x16x128xf32, #tpu.memory_space<vmem>>, vector<1x16x128xf32>
        %26 = vector.shape_cast %25 : vector<1x16x128xf32> to vector<16x128xf32>
        %27 = arith.maximumf %23, %26 : vector<16x128xf32>
        %28 = arith.index_cast %20 : i32 to index
        %c0_40 = arith.constant 0 : index
        %c0_41 = arith.constant 0 : index
        %29 = vector.load %arg4[%28, %c0_40, %c0_41] : memref<10x16x128xf32, #tpu.memory_space<vmem>>, vector<1x16x128xf32>
        %30 = vector.shape_cast %29 : vector<1x16x128xf32> to vector<16x128xf32>
        %31 = arith.maximumf %27, %30 : vector<16x128xf32>
        %32 = vector.extract_strided_slice %31 {offsets = [0, 0], sizes = [1, 128], strides = [1, 1]} : vector<16x128xf32> to vector<1x128xf32>
        %33 = vector.extract_strided_slice %31 {offsets = [0, 0], sizes = [15, 128], strides = [1, 1]} : vector<16x128xf32> to vector<15x128xf32>
        %34 = tpu.concatenate %32, %33 in 0 : vector<1x128xf32>, vector<15x128xf32> -> vector<16x128xf32>
        %35 = vector.extract_strided_slice %31 {offsets = [1, 0], sizes = [15, 128], strides = [1, 1]} : vector<16x128xf32> to vector<15x128xf32>
        %36 = vector.extract_strided_slice %31 {offsets = [15, 0], sizes = [1, 128], strides = [1, 1]} : vector<16x128xf32> to vector<1x128xf32>
        %37 = tpu.concatenate %35, %36 in 0 : vector<15x128xf32>, vector<1x128xf32> -> vector<16x128xf32>
        %38 = arith.select %3, %31, %37 : vector<16x128xi1>, vector<16x128xf32>
        %39 = arith.maximumf %34, %31 : vector<16x128xf32>
        %40 = arith.maximumf %39, %38 : vector<16x128xf32>
        %41 = vector.extract_strided_slice %40 {offsets = [0, 0], sizes = [16, 1], strides = [1, 1]} : vector<16x128xf32> to vector<16x1xf32>
        %42 = vector.extract_strided_slice %40 {offsets = [0, 0], sizes = [16, 127], strides = [1, 1]} : vector<16x128xf32> to vector<16x127xf32>
        %43 = tpu.concatenate %41, %42 in 1 : vector<16x1xf32>, vector<16x127xf32> -> vector<16x128xf32>
        %44 = vector.extract_strided_slice %40 {offsets = [0, 1], sizes = [16, 127], strides = [1, 1]} : vector<16x128xf32> to vector<16x127xf32>
        %45 = vector.extract_strided_slice %40 {offsets = [0, 127], sizes = [16, 1], strides = [1, 1]} : vector<16x128xf32> to vector<16x1xf32>
        %46 = tpu.concatenate %44, %45 in 1 : vector<16x127xf32>, vector<16x1xf32> -> vector<16x128xf32>
        %47 = arith.select %5, %40, %46 : vector<16x128xi1>, vector<16x128xf32>
        %48 = arith.maximumf %43, %40 : vector<16x128xf32>
        %49 = arith.maximumf %48, %47 : vector<16x128xf32>
        %50 = arith.index_cast %arg7 : i32 to index
        %c0_42 = arith.constant 0 : index
        %c0_43 = arith.constant 0 : index
        %51 = vector.load %arg3[%50, %c0_42, %c0_43] : memref<10x16x128xf32, #tpu.memory_space<vmem>>, vector<1x16x128xf32>
        %52 = vector.shape_cast %51 : vector<1x16x128xf32> to vector<16x128xf32>
        %53 = arith.subf %52, %49 : vector<16x128xf32>
        %cst_44 = arith.constant 0.000000e+00 : f32
        %54 = vector.broadcast %cst_44 : f32 to vector<16x128xf32>
        %55 = arith.maximumf %53, %54 : vector<16x128xf32>
        %56 = arith.index_cast %arg7 : i32 to index
        %c0_45 = arith.constant 0 : index
        %c0_46 = arith.constant 0 : index
        %57 = vector.load %arg5[%56, %c0_45, %c0_46] : memref<10x16x128xf32, #tpu.memory_space<vmem>>, vector<1x16x128xf32>
        %58 = vector.shape_cast %57 : vector<1x16x128xf32> to vector<16x128xf32>
        %59 = arith.mulf %58, %55 : vector<16x128xf32>
        %60 = arith.subf %55, %59 : vector<16x128xf32>
        %cst_47 = arith.constant 0.000000e+00 : f32
        %61 = vector.broadcast %cst_47 : f32 to vector<16x128xf32>
        %62 = arith.maximumf %60, %61 : vector<16x128xf32>
        %63 = arith.addf %58, %62 : vector<16x128xf32>
        %64 = arith.index_cast %arg7 : i32 to index
        %c0_48 = arith.constant 0 : index
        %c0_49 = arith.constant 0 : index
        %65 = vector.load %arg5[%64, %c0_48, %c0_49] : memref<10x16x128xf32, #tpu.memory_space<vmem>>, vector<1x16x128xf32>
        %66 = vector.shape_cast %65 : vector<1x16x128xf32> to vector<16x128xf32>
        %67 = vector.shape_cast %63 : vector<16x128xf32> to vector<1x16x128xf32>
        tpu.vector_store %arg5[%64, %c0_48, %c0_49], %67 {strides = array<i32>} : memref<10x16x128xf32, #tpu.memory_space<vmem>>, vector<1x16x128xf32>,
      }
      %c10_i32_24 = arith.constant 10 : i32
      %c0_i32_25 = arith.constant 0 : i32
      %c10_i32_26 = arith.constant 10 : i32
      %15 = arith.addi %c0_i32_25, %c10_i32_26 : i32
      %c1_i32_27 = arith.constant 1 : i32
      scf.for %arg7 = %c0_i32_25 to %15 step %c1_i32_27  : i32 {
        %c1_i32_33 = arith.constant 1 : i32
        %17 = arith.subi %arg7, %c1_i32_33 : i32
        %c0_i32_34 = arith.constant 0 : i32
        %18 = arith.maxsi %17, %c0_i32_34 : i32
        %c1_i32_35 = arith.constant 1 : i32
        %19 = arith.addi %arg7, %c1_i32_35 : i32
        %c9_i32 = arith.constant 9 : i32
        %20 = arith.minsi %19, %c9_i32 : i32
        %21 = arith.index_cast %arg7 : i32 to index
        %c0_36 = arith.constant 0 : index
        %c0_37 = arith.constant 0 : index
        %22 = vector.load %arg4[%21, %c0_36, %c0_37] : memref<10x16x128xf32, #tpu.memory_space<vmem>>, vector<1x16x128xf32>
        %23 = vector.shape_cast %22 : vector<1x16x128xf32> to vector<16x128xf32>
        %24 = arith.index_cast %18 : i32 to index
        %c0_38 = arith.constant 0 : index
        %c0_39 = arith.constant 0 : index
        %25 = vector.load %arg4[%24, %c0_38, %c0_39] : memref<10x16x128xf32, #tpu.memory_space<vmem>>, vector<1x16x128xf32>
        %26 = vector.shape_cast %25 : vector<1x16x128xf32> to vector<16x128xf32>
        %27 = arith.minimumf %26, %23 : vector<16x128xf32>
        %28 = arith.index_cast %20 : i32 to index
        %c0_40 = arith.constant 0 : index
        %c0_41 = arith.constant 0 : index
        %29 = vector.load %arg4[%28, %c0_40, %c0_41] : memref<10x16x128xf32, #tpu.memory_space<vmem>>, vector<1x16x128xf32>
        %30 = vector.shape_cast %29 : vector<1x16x128xf32> to vector<16x128xf32>
        %31 = arith.minimumf %27, %30 : vector<16x128xf32>
        %32 = vector.extract_strided_slice %23 {offsets = [0, 0], sizes = [1, 128], strides = [1, 1]} : vector<16x128xf32> to vector<1x128xf32>
        %33 = vector.extract_strided_slice %23 {offsets = [0, 0], sizes = [15, 128], strides = [1, 1]} : vector<16x128xf32> to vector<15x128xf32>
        %34 = tpu.concatenate %32, %33 in 0 : vector<1x128xf32>, vector<15x128xf32> -> vector<16x128xf32>
        %35 = vector.extract_strided_slice %23 {offsets = [1, 0], sizes = [15, 128], strides = [1, 1]} : vector<16x128xf32> to vector<15x128xf32>
        %36 = vector.extract_strided_slice %23 {offsets = [15, 0], sizes = [1, 128], strides = [1, 1]} : vector<16x128xf32> to vector<1x128xf32>
        %37 = tpu.concatenate %35, %36 in 0 : vector<15x128xf32>, vector<1x128xf32> -> vector<16x128xf32>
        %38 = arith.select %3, %23, %37 : vector<16x128xi1>, vector<16x128xf32>
        %39 = arith.minimumf %34, %23 : vector<16x128xf32>
        %40 = arith.minimumf %39, %38 : vector<16x128xf32>
        %41 = arith.minimumf %31, %40 : vector<16x128xf32>
        %42 = vector.extract_strided_slice %23 {offsets = [0, 0], sizes = [16, 1], strides = [1, 1]} : vector<16x128xf32> to vector<16x1xf32>
        %43 = vector.extract_strided_slice %23 {offsets = [0, 0], sizes = [16, 127], strides = [1, 1]} : vector<16x128xf32> to vector<16x127xf32>
        %44 = tpu.concatenate %42, %43 in 1 : vector<16x1xf32>, vector<16x127xf32> -> vector<16x128xf32>
        %45 = vector.extract_strided_slice %23 {offsets = [0, 1], sizes = [16, 127], strides = [1, 1]} : vector<16x128xf32> to vector<16x127xf32>
        %46 = vector.extract_strided_slice %23 {offsets = [0, 127], sizes = [16, 1], strides = [1, 1]} : vector<16x128xf32> to vector<16x1xf32>
        %47 = tpu.concatenate %45, %46 in 1 : vector<16x127xf32>, vector<16x1xf32> -> vector<16x128xf32>
        %48 = arith.select %5, %23, %47 : vector<16x128xi1>, vector<16x128xf32>
        %49 = arith.minimumf %44, %23 : vector<16x128xf32>
        %50 = arith.minimumf %49, %48 : vector<16x128xf32>
        %51 = arith.minimumf %41, %50 : vector<16x128xf32>
        %52 = arith.index_cast %arg7 : i32 to index
        %c0_42 = arith.constant 0 : index
        %c0_43 = arith.constant 0 : index
        %53 = vector.load %arg3[%52, %c0_42, %c0_43] : memref<10x16x128xf32, #tpu.memory_space<vmem>>, vector<1x16x128xf32>
        %54 = vector.shape_cast %53 : vector<1x16x128xf32> to vector<16x128xf32>
        %55 = vector.shape_cast %51 : vector<16x128xf32> to vector<1x16x128xf32>
        tpu.vector_store %arg3[%52, %c0_42, %c0_43], %55 {strides = array<i32>} : memref<10x16x128xf32, #tpu.memory_space<vmem>>, vector<1x16x128xf32>,
      }
      %c10_i32_28 = arith.constant 10 : i32
      %c0_i32_29 = arith.constant 0 : i32
      %c10_i32_30 = arith.constant 10 : i32
      %16 = arith.addi %c0_i32_29, %c10_i32_30 : i32
      %c1_i32_31 = arith.constant 1 : i32
      scf.for %arg7 = %c0_i32_29 to %16 step %c1_i32_31  : i32 {
        %c1_i32_33 = arith.constant 1 : i32
        %17 = arith.subi %arg7, %c1_i32_33 : i32
        %c0_i32_34 = arith.constant 0 : i32
        %18 = arith.maxsi %17, %c0_i32_34 : i32
        %c1_i32_35 = arith.constant 1 : i32
        %19 = arith.addi %arg7, %c1_i32_35 : i32
        %c9_i32 = arith.constant 9 : i32
        %20 = arith.minsi %19, %c9_i32 : i32
        %21 = arith.index_cast %18 : i32 to index
        %c0_36 = arith.constant 0 : index
        %c0_37 = arith.constant 0 : index
        %22 = vector.load %arg3[%21, %c0_36, %c0_37] : memref<10x16x128xf32, #tpu.memory_space<vmem>>, vector<1x16x128xf32>
        %23 = vector.shape_cast %22 : vector<1x16x128xf32> to vector<16x128xf32>
        %24 = arith.index_cast %arg7 : i32 to index
        %c0_38 = arith.constant 0 : index
        %c0_39 = arith.constant 0 : index
        %25 = vector.load %arg3[%24, %c0_38, %c0_39] : memref<10x16x128xf32, #tpu.memory_space<vmem>>, vector<1x16x128xf32>
        %26 = vector.shape_cast %25 : vector<1x16x128xf32> to vector<16x128xf32>
        %27 = arith.maximumf %23, %26 : vector<16x128xf32>
        %28 = arith.index_cast %20 : i32 to index
        %c0_40 = arith.constant 0 : index
        %c0_41 = arith.constant 0 : index
        %29 = vector.load %arg3[%28, %c0_40, %c0_41] : memref<10x16x128xf32, #tpu.memory_space<vmem>>, vector<1x16x128xf32>
        %30 = vector.shape_cast %29 : vector<1x16x128xf32> to vector<16x128xf32>
        %31 = arith.maximumf %27, %30 : vector<16x128xf32>
        %32 = vector.extract_strided_slice %31 {offsets = [0, 0], sizes = [1, 128], strides = [1, 1]} : vector<16x128xf32> to vector<1x128xf32>
        %33 = vector.extract_strided_slice %31 {offsets = [0, 0], sizes = [15, 128], strides = [1, 1]} : vector<16x128xf32> to vector<15x128xf32>
        %34 = tpu.concatenate %32, %33 in 0 : vector<1x128xf32>, vector<15x128xf32> -> vector<16x128xf32>
        %35 = vector.extract_strided_slice %31 {offsets = [1, 0], sizes = [15, 128], strides = [1, 1]} : vector<16x128xf32> to vector<15x128xf32>
        %36 = vector.extract_strided_slice %31 {offsets = [15, 0], sizes = [1, 128], strides = [1, 1]} : vector<16x128xf32> to vector<1x128xf32>
        %37 = tpu.concatenate %35, %36 in 0 : vector<15x128xf32>, vector<1x128xf32> -> vector<16x128xf32>
        %38 = arith.select %3, %31, %37 : vector<16x128xi1>, vector<16x128xf32>
        %39 = arith.maximumf %34, %31 : vector<16x128xf32>
        %40 = arith.maximumf %39, %38 : vector<16x128xf32>
        %41 = vector.extract_strided_slice %40 {offsets = [0, 0], sizes = [16, 1], strides = [1, 1]} : vector<16x128xf32> to vector<16x1xf32>
        %42 = vector.extract_strided_slice %40 {offsets = [0, 0], sizes = [16, 127], strides = [1, 1]} : vector<16x128xf32> to vector<16x127xf32>
        %43 = tpu.concatenate %41, %42 in 1 : vector<16x1xf32>, vector<16x127xf32> -> vector<16x128xf32>
        %44 = vector.extract_strided_slice %40 {offsets = [0, 1], sizes = [16, 127], strides = [1, 1]} : vector<16x128xf32> to vector<16x127xf32>
        %45 = vector.extract_strided_slice %40 {offsets = [0, 127], sizes = [16, 1], strides = [1, 1]} : vector<16x128xf32> to vector<16x1xf32>
        %46 = tpu.concatenate %44, %45 in 1 : vector<16x127xf32>, vector<16x1xf32> -> vector<16x128xf32>
        %47 = arith.select %5, %40, %46 : vector<16x128xi1>, vector<16x128xf32>
        %48 = arith.maximumf %43, %40 : vector<16x128xf32>
        %49 = arith.maximumf %48, %47 : vector<16x128xf32>
        %50 = arith.index_cast %arg7 : i32 to index
        %c0_42 = arith.constant 0 : index
        %c0_43 = arith.constant 0 : index
        %51 = vector.load %arg4[%50, %c0_42, %c0_43] : memref<10x16x128xf32, #tpu.memory_space<vmem>>, vector<1x16x128xf32>
        %52 = vector.shape_cast %51 : vector<1x16x128xf32> to vector<16x128xf32>
        %53 = arith.subf %52, %49 : vector<16x128xf32>
        %cst_44 = arith.constant 0.000000e+00 : f32
        %54 = vector.broadcast %cst_44 : f32 to vector<16x128xf32>
        %55 = arith.maximumf %53, %54 : vector<16x128xf32>
        %56 = arith.index_cast %arg7 : i32 to index
        %c0_45 = arith.constant 0 : index
        %c0_46 = arith.constant 0 : index
        %57 = vector.load %arg5[%56, %c0_45, %c0_46] : memref<10x16x128xf32, #tpu.memory_space<vmem>>, vector<1x16x128xf32>
        %58 = vector.shape_cast %57 : vector<1x16x128xf32> to vector<16x128xf32>
        %59 = arith.mulf %58, %55 : vector<16x128xf32>
        %60 = arith.subf %55, %59 : vector<16x128xf32>
        %cst_47 = arith.constant 0.000000e+00 : f32
        %61 = vector.broadcast %cst_47 : f32 to vector<16x128xf32>
        %62 = arith.maximumf %60, %61 : vector<16x128xf32>
        %63 = arith.addf %58, %62 : vector<16x128xf32>
        %64 = arith.index_cast %arg7 : i32 to index
        %c0_48 = arith.constant 0 : index
        %c0_49 = arith.constant 0 : index
        %65 = vector.load %arg5[%64, %c0_48, %c0_49] : memref<10x16x128xf32, #tpu.memory_space<vmem>>, vector<1x16x128xf32>
        %66 = vector.shape_cast %65 : vector<1x16x128xf32> to vector<16x128xf32>
        %67 = vector.shape_cast %63 : vector<16x128xf32> to vector<1x16x128xf32>
        tpu.vector_store %arg5[%64, %c0_48, %c0_49], %67 {strides = array<i32>} : memref<10x16x128xf32, #tpu.memory_space<vmem>>, vector<1x16x128xf32>,
      }
      %c10_i32_32 = arith.constant 10 : i32
    }
    %c0_i32_5 = arith.constant 0 : i32
    %c10_i32_6 = arith.constant 10 : i32
    %10 = arith.addi %c0_i32_5, %c10_i32_6 : i32
    %c1_i32_7 = arith.constant 1 : i32
    scf.for %arg6 = %c0_i32_5 to %10 step %c1_i32_7  : i32 {
      %c1_i32_17 = arith.constant 1 : i32
      %13 = arith.subi %arg6, %c1_i32_17 : i32
      %c0_i32_18 = arith.constant 0 : i32
      %14 = arith.maxsi %13, %c0_i32_18 : i32
      %c1_i32_19 = arith.constant 1 : i32
      %15 = arith.addi %arg6, %c1_i32_19 : i32
      %c9_i32 = arith.constant 9 : i32
      %16 = arith.minsi %15, %c9_i32 : i32
      %17 = arith.index_cast %arg6 : i32 to index
      %c0_20 = arith.constant 0 : index
      %c0_21 = arith.constant 0 : index
      %18 = vector.load %arg3[%17, %c0_20, %c0_21] : memref<10x16x128xf32, #tpu.memory_space<vmem>>, vector<1x16x128xf32>
      %19 = vector.shape_cast %18 : vector<1x16x128xf32> to vector<16x128xf32>
      %20 = arith.index_cast %14 : i32 to index
      %c0_22 = arith.constant 0 : index
      %c0_23 = arith.constant 0 : index
      %21 = vector.load %arg3[%20, %c0_22, %c0_23] : memref<10x16x128xf32, #tpu.memory_space<vmem>>, vector<1x16x128xf32>
      %22 = vector.shape_cast %21 : vector<1x16x128xf32> to vector<16x128xf32>
      %23 = arith.minimumf %22, %19 : vector<16x128xf32>
      %24 = arith.index_cast %16 : i32 to index
      %c0_24 = arith.constant 0 : index
      %c0_25 = arith.constant 0 : index
      %25 = vector.load %arg3[%24, %c0_24, %c0_25] : memref<10x16x128xf32, #tpu.memory_space<vmem>>, vector<1x16x128xf32>
      %26 = vector.shape_cast %25 : vector<1x16x128xf32> to vector<16x128xf32>
      %27 = arith.minimumf %23, %26 : vector<16x128xf32>
      %28 = vector.extract_strided_slice %19 {offsets = [0, 0], sizes = [1, 128], strides = [1, 1]} : vector<16x128xf32> to vector<1x128xf32>
      %29 = vector.extract_strided_slice %19 {offsets = [0, 0], sizes = [15, 128], strides = [1, 1]} : vector<16x128xf32> to vector<15x128xf32>
      %30 = tpu.concatenate %28, %29 in 0 : vector<1x128xf32>, vector<15x128xf32> -> vector<16x128xf32>
      %31 = vector.extract_strided_slice %19 {offsets = [1, 0], sizes = [15, 128], strides = [1, 1]} : vector<16x128xf32> to vector<15x128xf32>
      %32 = vector.extract_strided_slice %19 {offsets = [15, 0], sizes = [1, 128], strides = [1, 1]} : vector<16x128xf32> to vector<1x128xf32>
      %33 = tpu.concatenate %31, %32 in 0 : vector<15x128xf32>, vector<1x128xf32> -> vector<16x128xf32>
      %34 = arith.select %3, %19, %33 : vector<16x128xi1>, vector<16x128xf32>
      %35 = arith.minimumf %30, %19 : vector<16x128xf32>
      %36 = arith.minimumf %35, %34 : vector<16x128xf32>
      %37 = arith.minimumf %27, %36 : vector<16x128xf32>
      %38 = vector.extract_strided_slice %19 {offsets = [0, 0], sizes = [16, 1], strides = [1, 1]} : vector<16x128xf32> to vector<16x1xf32>
      %39 = vector.extract_strided_slice %19 {offsets = [0, 0], sizes = [16, 127], strides = [1, 1]} : vector<16x128xf32> to vector<16x127xf32>
      %40 = tpu.concatenate %38, %39 in 1 : vector<16x1xf32>, vector<16x127xf32> -> vector<16x128xf32>
      %41 = vector.extract_strided_slice %19 {offsets = [0, 1], sizes = [16, 127], strides = [1, 1]} : vector<16x128xf32> to vector<16x127xf32>
      %42 = vector.extract_strided_slice %19 {offsets = [0, 127], sizes = [16, 1], strides = [1, 1]} : vector<16x128xf32> to vector<16x1xf32>
      %43 = tpu.concatenate %41, %42 in 1 : vector<16x127xf32>, vector<16x1xf32> -> vector<16x128xf32>
      %44 = arith.select %5, %19, %43 : vector<16x128xi1>, vector<16x128xf32>
      %45 = arith.minimumf %40, %19 : vector<16x128xf32>
      %46 = arith.minimumf %45, %44 : vector<16x128xf32>
      %47 = arith.minimumf %37, %46 : vector<16x128xf32>
      %48 = arith.index_cast %arg6 : i32 to index
      %c0_26 = arith.constant 0 : index
      %c0_27 = arith.constant 0 : index
      %49 = vector.load %arg4[%48, %c0_26, %c0_27] : memref<10x16x128xf32, #tpu.memory_space<vmem>>, vector<1x16x128xf32>
      %50 = vector.shape_cast %49 : vector<1x16x128xf32> to vector<16x128xf32>
      %51 = vector.shape_cast %47 : vector<16x128xf32> to vector<1x16x128xf32>
      tpu.vector_store %arg4[%48, %c0_26, %c0_27], %51 {strides = array<i32>} : memref<10x16x128xf32, #tpu.memory_space<vmem>>, vector<1x16x128xf32>,
    }
    %c10_i32_8 = arith.constant 10 : i32
    %c0_i32_9 = arith.constant 0 : i32
    %c10_i32_10 = arith.constant 10 : i32
    %11 = arith.addi %c0_i32_9, %c10_i32_10 : i32
    %c1_i32_11 = arith.constant 1 : i32
    scf.for %arg6 = %c0_i32_9 to %11 step %c1_i32_11  : i32 {
      %c1_i32_17 = arith.constant 1 : i32
      %13 = arith.subi %arg6, %c1_i32_17 : i32
      %c0_i32_18 = arith.constant 0 : i32
      %14 = arith.maxsi %13, %c0_i32_18 : i32
      %c1_i32_19 = arith.constant 1 : i32
      %15 = arith.addi %arg6, %c1_i32_19 : i32
      %c9_i32 = arith.constant 9 : i32
      %16 = arith.minsi %15, %c9_i32 : i32
      %17 = arith.index_cast %14 : i32 to index
      %c0_20 = arith.constant 0 : index
      %c0_21 = arith.constant 0 : index
      %18 = vector.load %arg4[%17, %c0_20, %c0_21] : memref<10x16x128xf32, #tpu.memory_space<vmem>>, vector<1x16x128xf32>
      %19 = vector.shape_cast %18 : vector<1x16x128xf32> to vector<16x128xf32>
      %20 = arith.index_cast %arg6 : i32 to index
      %c0_22 = arith.constant 0 : index
      %c0_23 = arith.constant 0 : index
      %21 = vector.load %arg4[%20, %c0_22, %c0_23] : memref<10x16x128xf32, #tpu.memory_space<vmem>>, vector<1x16x128xf32>
      %22 = vector.shape_cast %21 : vector<1x16x128xf32> to vector<16x128xf32>
      %23 = arith.maximumf %19, %22 : vector<16x128xf32>
      %24 = arith.index_cast %16 : i32 to index
      %c0_24 = arith.constant 0 : index
      %c0_25 = arith.constant 0 : index
      %25 = vector.load %arg4[%24, %c0_24, %c0_25] : memref<10x16x128xf32, #tpu.memory_space<vmem>>, vector<1x16x128xf32>
      %26 = vector.shape_cast %25 : vector<1x16x128xf32> to vector<16x128xf32>
      %27 = arith.maximumf %23, %26 : vector<16x128xf32>
      %28 = vector.extract_strided_slice %27 {offsets = [0, 0], sizes = [1, 128], strides = [1, 1]} : vector<16x128xf32> to vector<1x128xf32>
      %29 = vector.extract_strided_slice %27 {offsets = [0, 0], sizes = [15, 128], strides = [1, 1]} : vector<16x128xf32> to vector<15x128xf32>
      %30 = tpu.concatenate %28, %29 in 0 : vector<1x128xf32>, vector<15x128xf32> -> vector<16x128xf32>
      %31 = vector.extract_strided_slice %27 {offsets = [1, 0], sizes = [15, 128], strides = [1, 1]} : vector<16x128xf32> to vector<15x128xf32>
      %32 = vector.extract_strided_slice %27 {offsets = [15, 0], sizes = [1, 128], strides = [1, 1]} : vector<16x128xf32> to vector<1x128xf32>
      %33 = tpu.concatenate %31, %32 in 0 : vector<15x128xf32>, vector<1x128xf32> -> vector<16x128xf32>
      %34 = arith.select %3, %27, %33 : vector<16x128xi1>, vector<16x128xf32>
      %35 = arith.maximumf %30, %27 : vector<16x128xf32>
      %36 = arith.maximumf %35, %34 : vector<16x128xf32>
      %37 = vector.extract_strided_slice %36 {offsets = [0, 0], sizes = [16, 1], strides = [1, 1]} : vector<16x128xf32> to vector<16x1xf32>
      %38 = vector.extract_strided_slice %36 {offsets = [0, 0], sizes = [16, 127], strides = [1, 1]} : vector<16x128xf32> to vector<16x127xf32>
      %39 = tpu.concatenate %37, %38 in 1 : vector<16x1xf32>, vector<16x127xf32> -> vector<16x128xf32>
      %40 = vector.extract_strided_slice %36 {offsets = [0, 1], sizes = [16, 127], strides = [1, 1]} : vector<16x128xf32> to vector<16x127xf32>
      %41 = vector.extract_strided_slice %36 {offsets = [0, 127], sizes = [16, 1], strides = [1, 1]} : vector<16x128xf32> to vector<16x1xf32>
      %42 = tpu.concatenate %40, %41 in 1 : vector<16x127xf32>, vector<16x1xf32> -> vector<16x128xf32>
      %43 = arith.select %5, %36, %42 : vector<16x128xi1>, vector<16x128xf32>
      %44 = arith.maximumf %39, %36 : vector<16x128xf32>
      %45 = arith.maximumf %44, %43 : vector<16x128xf32>
      %46 = arith.index_cast %arg6 : i32 to index
      %c0_26 = arith.constant 0 : index
      %c0_27 = arith.constant 0 : index
      %47 = vector.load %arg3[%46, %c0_26, %c0_27] : memref<10x16x128xf32, #tpu.memory_space<vmem>>, vector<1x16x128xf32>
      %48 = vector.shape_cast %47 : vector<1x16x128xf32> to vector<16x128xf32>
      %49 = arith.subf %48, %45 : vector<16x128xf32>
      %cst_28 = arith.constant 0.000000e+00 : f32
      %50 = vector.broadcast %cst_28 : f32 to vector<16x128xf32>
      %51 = arith.maximumf %49, %50 : vector<16x128xf32>
      %52 = arith.index_cast %arg6 : i32 to index
      %c0_29 = arith.constant 0 : index
      %c0_30 = arith.constant 0 : index
      %53 = vector.load %arg5[%52, %c0_29, %c0_30] : memref<10x16x128xf32, #tpu.memory_space<vmem>>, vector<1x16x128xf32>
      %54 = vector.shape_cast %53 : vector<1x16x128xf32> to vector<16x128xf32>
      %55 = arith.mulf %54, %51 : vector<16x128xf32>
      %56 = arith.subf %51, %55 : vector<16x128xf32>
      %cst_31 = arith.constant 0.000000e+00 : f32
      %57 = vector.broadcast %cst_31 : f32 to vector<16x128xf32>
      %58 = arith.maximumf %56, %57 : vector<16x128xf32>
      %59 = arith.addf %54, %58 : vector<16x128xf32>
      %60 = arith.index_cast %arg6 : i32 to index
      %c0_32 = arith.constant 0 : index
      %c0_33 = arith.constant 0 : index
      %61 = vector.load %arg5[%60, %c0_32, %c0_33] : memref<10x16x128xf32, #tpu.memory_space<vmem>>, vector<1x16x128xf32>
      %62 = vector.shape_cast %61 : vector<1x16x128xf32> to vector<16x128xf32>
      %63 = vector.shape_cast %59 : vector<16x128xf32> to vector<1x16x128xf32>
      tpu.vector_store %arg5[%60, %c0_32, %c0_33], %63 {strides = array<i32>} : memref<10x16x128xf32, #tpu.memory_space<vmem>>, vector<1x16x128xf32>,
    }
    %c10_i32_12 = arith.constant 10 : i32
    %c0_i32_13 = arith.constant 0 : i32
    %c10_i32_14 = arith.constant 10 : i32
    %12 = arith.addi %c0_i32_13, %c10_i32_14 : i32
    %c1_i32_15 = arith.constant 1 : i32
    scf.for %arg6 = %c0_i32_13 to %12 step %c1_i32_15  : i32 {
      %13 = arith.index_cast %arg6 : i32 to index
      %c0_17 = arith.constant 0 : index
      %c0_18 = arith.constant 0 : index
      %14 = vector.load %arg5[%13, %c0_17, %c0_18] : memref<10x16x128xf32, #tpu.memory_space<vmem>>, vector<1x16x128xf32>
      %15 = vector.shape_cast %14 : vector<1x16x128xf32> to vector<16x128xf32>
      %c0_19 = arith.constant 0 : index
      %16 = arith.index_cast %arg6 : i32 to index
      %c0_20 = arith.constant 0 : index
      %c0_21 = arith.constant 0 : index
      %17 = vector.load %arg2[%c0_19, %16, %c0_20, %c0_21] : memref<1x10x16x128xf32, #tpu.memory_space<vmem>>, vector<1x1x16x128xf32>
      %18 = vector.shape_cast %17 : vector<1x1x16x128xf32> to vector<16x128xf32>
      %19 = vector.shape_cast %15 : vector<16x128xf32> to vector<1x1x16x128xf32>
      tpu.vector_store %arg2[%c0_19, %16, %c0_20, %c0_21], %19 {strides = array<i32>} : memref<1x10x16x128xf32, #tpu.memory_space<vmem>>, vector<1x1x16x128xf32>,
    }
    %c10_i32_16 = arith.constant 10 : i32
    return
  }
  func.func @transform_0(%arg0: i32) -> (i32, i32, i32, i32) {
    %c0_i32 = arith.constant 0 : i32
    %c0_i32_0 = arith.constant 0 : i32
    %c0_i32_1 = arith.constant 0 : i32
    %c0_i32_2 = arith.constant 0 : i32
    return %arg0, %c0_i32, %c0_i32_0, %c0_i32_1 : i32, i32, i32, i32
  }
  func.func @transform_1(%arg0: i32) -> (i32, i32, i32, i32) {
    %c0_i32 = arith.constant 0 : i32
    %c0_i32_0 = arith.constant 0 : i32
    %c0_i32_1 = arith.constant 0 : i32
    %c0_i32_2 = arith.constant 0 : i32
    return %arg0, %c0_i32, %c0_i32_0, %c0_i32_1 : i32, i32, i32, i32
  }
}

</mosaic_0001>

<llo_original>
// kernel: tpu_custom_call.1
$region0: #{tpu_custom_call.1}
  #allocation0 [shape = 'u32[]', space=smem, size = 0x4, offset = 0x4, fixed_abs, tag = 'smem constant byte address 0x4 - core index']
  #allocation1 [shape = 'u32[144,128]{1,0:T(1,128)}', space=vmem, size = 0x12000, scoped, tag = 'internal scratch']
  #allocation2 [shape = 'f32[8,128]{1,0:T(8,128)}', space=vmem, size = 0x1000, scoped, tag = 'scratch operand']
  %s0 = inlined_call_operand.hbm [shape: f32[2,8,128], index: 0, kind: input, shape index: {}]
  %s1 = inlined_call_operand.hbm [shape: f32[2,8,128], index: 1, kind: output, shape index: {}]
  %s2 = sld [smem:[#allocation0]]
  $region41: #{tpu_custom_call.1} parent=0
    _
  %s4 = ssub.s32 1, %s2
  %s5 = scalar_select 0, %s4, %s2
  $region1: #{tpu_custom_call.1} parent=0
    #allocation3 [shape = 'u8[4096]{0}', space=vmem, size = 0x1000, scoped, tag = 'input window, operand 0, single buffered']
    #allocation4 [shape = 's32[2]{0}', space=sflag, size = 0x8, scoped, tag = 'scoped memory for tpu_custom_call.1']
    #allocation5 [shape = 's32[2]{0}', space=sflag, size = 0x8, scoped, tag = 'scoped memory for tpu_custom_call.1']
    #allocation6 [shape = 'u8[4096]{0}', space=vmem, size = 0x1000, scoped, tag = 'output window, operand 0, single buffered']
    %6 = vsyncpa [#allocation4], 0
    %7 = vsyncpa [#allocation5], 0
    loop: start=0, step=1, limit=4
    $region2: #{tpu_custom_call.1} parent=1 // loop_pre_header
      _
    $region3: #{tpu_custom_call.1} parent=1 // loop_header
      %s9 = sphi 0, %s13
      %p10 = scmp.ge.s32.totalorder %s9, 4
      %s19 = sphi 0, %s21
      %s22 = sphi 0, %s19
      %s23 = sphi 0, %s22
      %s39 = sphi 0, %s23
      %s45 = sphi 0, %s47
      %s48 = sphi 0, %s45
      %s49 = sphi 0, %s48
      %s65 = sphi 0, %s49
    $region4: #{tpu_custom_call.1} parent=1 // loop_header_branch
      %12 = sbr.rel (%p10) target = $region8
    $region5: #{tpu_custom_call.1} parent=1 // loop_body
      %s14 = ssub.s32 %s9, 1
      %s15 = ssub.s32 %s9, 2
      %s16 = sadd.s32 %s9, 1
      %s17 = ssub.s32 %s9, %s16
      %p18 = scmp.eq.s32.totalorder %s17, 0
      %s20 = sadd.s32 %s19, 1
      %s21 = scalar_select %p18, %s19, %s20
      %p24 = pneg %p18
      %p25 = scmp.eq.s32.totalorder %s9, 1
      %p26 = por %p24, %p25
      %p27 = scmp.ne.s32.totalorder %s19, %s22
      %p28 = scmp.eq.s32.totalorder %s9, 0
      %p29 = por %p27, %p28
      %p30 = scmp.ne.s32.totalorder %s19, %s22
      %p31 = scmp.eq.s32.totalorder %s14, 1
      %p32 = por %p30, %p31
      %p33 = scmp.ne.s32.totalorder %s22, %s23
      %p34 = scmp.eq.s32.totalorder %s14, 0
      %p35 = por %p33, %p34
      %p36 = scmp.ne.s32.totalorder %s22, %s23
      %p37 = scmp.eq.s32.totalorder %s15, 1
      %p38 = por %p36, %p37
      %p40 = scmp.ne.s32.totalorder %s23, %s39
      %p41 = scmp.eq.s32.totalorder %s15, 0
      %p42 = por %p40, %p41
      %s43 = ssub.s32 %s9, %s16
      %p44 = scmp.eq.s32.totalorder %s43, 0
      %s46 = sadd.s32 %s45, 1
      %s47 = scalar_select %p44, %s45, %s46
      %p50 = pneg %p44
      %p51 = scmp.eq.s32.totalorder %s9, 1
      %p52 = por %p50, %p51
      %p53 = scmp.ne.s32.totalorder %s45, %s48
      %p54 = scmp.eq.s32.totalorder %s9, 0
      %p55 = por %p53, %p54
      %p56 = scmp.ne.s32.totalorder %s45, %s48
      %p57 = scmp.eq.s32.totalorder %s14, 1
      %p58 = por %p56, %p57
      %p59 = scmp.ne.s32.totalorder %s48, %s49
      %p60 = scmp.eq.s32.totalorder %s14, 0
      %p61 = por %p59, %p60
      %p62 = scmp.ne.s32.totalorder %s48, %s49
      %p63 = scmp.eq.s32.totalorder %s15, 1
      %p64 = por %p62, %p63
      %p66 = scmp.ne.s32.totalorder %s49, %s65
      %p67 = scmp.eq.s32.totalorder %s15, 0
      %p68 = por %p66, %p67
      %p69 = scmp.le.s32.totalorder 1, %s9
      %p70 = scmp.lt.s32.totalorder %s9, 3
      %p71 = pnand %p69, %p70
      %p72 = pneg %p71
      // Predicated region
      $region9: #{tpu_custom_call.1} parent=5 // pred_check
        _
      $region10: #{tpu_custom_call.1} parent=5 // pred_check_branch
        %74 = sbr.rel (%p71) target = $region12
      $region11: #{tpu_custom_call.1} parent=5 // pred_region
        %s75 = ssub.s32 %s9, 1
        // Predicated region
        $region13: #{tpu_custom_call.1} parent=11 // pred_check
          %p76 = pneg %p35
        $region14: #{tpu_custom_call.1} parent=11 // pred_check_branch
          %78 = sbr.rel (%p76) target = $region16
        $region15: #{tpu_custom_call.1} parent=11 // pred_region
          %s80 = ssub.s32 128, 128
          %81 = vsyncadd [#allocation4], %s80
          %s82 = smul.addr %s14, 128
          %s83 = scalar_lea.hbm %s0, %s82
          %s85 = sshll.u32 [#allocation3], 4
          %s86 = int_to_ptr.vmem [resolvable:$true] %s85
          %88 = dma.hbm_to_vmem [thread:$0]  %s83, 128, %s86, [#allocation4]
        $region16: #{tpu_custom_call.1} parent=11 // pred_fallthru
          _
      $region12: #{tpu_custom_call.1} parent=5 // pred_fallthru
        _
      %p89 = scmp.lt.s32.totalorder %s9, 2
      // Predicated region
      $region17: #{tpu_custom_call.1} parent=5 // pred_check
        %p90 = pneg %p89
      $region18: #{tpu_custom_call.1} parent=5 // pred_check_branch
        %92 = sbr.rel (%p90) target = $region20
      $region19: #{tpu_custom_call.1} parent=5 // pred_region
        _
      $region20: #{tpu_custom_call.1} parent=5 // pred_fallthru
        _
      %p93 = scmp.le.s32.totalorder 1, %s9
      %p94 = scmp.lt.s32.totalorder %s9, 3
      %p95 = pnand %p93, %p94
      %p96 = pneg %p95
      // Predicated region
      $region21: #{tpu_custom_call.1} parent=5 // pred_check
        _
      $region22: #{tpu_custom_call.1} parent=5 // pred_check_branch
        %98 = sbr.rel (%p95) target = $region24
      $region23: #{tpu_custom_call.1} parent=5 // pred_region
        %s99 = ssub.s32 %s9, 1
        // Predicated region
        $region25: #{tpu_custom_call.1} parent=23 // pred_check
          %p100 = pneg %p35
        $region26: #{tpu_custom_call.1} parent=23 // pred_check_branch
          %102 = sbr.rel (%p100) target = $region28
        $region27: #{tpu_custom_call.1} parent=23 // pred_region
          %103 = dma.done [#allocation4], 128
        $region28: #{tpu_custom_call.1} parent=23 // pred_fallthru
          _
        %p104 = pneg %p35
        %p105 = pneg %p32
        %p106 = pneg %p61
        %p107 = pneg %p58
        %v108 = vld [vmem:[#allocation3] sm:$0xff]
        %v109 = vmul.f32 %v108, 2.0
        %110 = vst [vmem:[#allocation2] sm:$0xff] %v109
        %v111 = vld [vmem:[#allocation2] sm:$0xff]
        %112 = vst [vmem:[#allocation6] sm:$0xff] %v111
        // Predicated region
        $region29: #{tpu_custom_call.1} parent=23 // pred_check
          %p113 = pneg %p58
        $region30: #{tpu_custom_call.1} parent=23 // pred_check_branch
          %115 = sbr.rel (%p113) target = $region32
        $region31: #{tpu_custom_call.1} parent=23 // pred_region
          %s117 = ssub.s32 128, 128
          %118 = vsyncadd [#allocation5], %s117
          %s119 = smul.addr %s14, 128
          %s120 = scalar_lea.hbm %s1, %s119
          %s122 = sshll.u32 [#allocation6], 4
          %s123 = int_to_ptr.vmem [resolvable:$true] %s122
          %125 = dma.vmem_to_hbm [thread:$0]  %s123, 128, %s120, [#allocation5]
        $region32: #{tpu_custom_call.1} parent=23 // pred_fallthru
          _
        // Predicated region
        $region33: #{tpu_custom_call.1} parent=23 // pred_check
          %p126 = pneg %p58
        $region34: #{tpu_custom_call.1} parent=23 // pred_check_branch
          %128 = sbr.rel (%p126) target = $region36
        $region35: #{tpu_custom_call.1} parent=23 // pred_region
          %129 = dma.done [#allocation5], 128
        $region36: #{tpu_custom_call.1} parent=23 // pred_fallthru
          _
      $region24: #{tpu_custom_call.1} parent=5 // pred_fallthru
        _
      %p130 = scmp.le.s32.totalorder 2, %s9
      // Predicated region
      $region37: #{tpu_custom_call.1} parent=5 // pred_check
        %p131 = pneg %p130
      $region38: #{tpu_custom_call.1} parent=5 // pred_check_branch
        %133 = sbr.rel (%p131) target = $region40
      $region39: #{tpu_custom_call.1} parent=5 // pred_region
        %s134 = ssub.s32 %s9, 2
      $region40: #{tpu_custom_call.1} parent=5 // pred_fallthru
        _
    $region6: #{tpu_custom_call.1} parent=1 // loop_footer
      %s13 = sadd.s32 1, %s9
    $region7: #{tpu_custom_call.1} parent=1 // loop_footer_branch
      %8 = sbr.rel target = $region3
    $region8: #{tpu_custom_call.1} parent=1 // loop_exit
      _
    %135 = vsyncpa [#allocation4], 1
    %s136 = scalar_lea.sflag [#allocation4], 1
    %137 = vsyncpa %s136, 1
    %138 = vsyncpa [#allocation5], 1
    %s139 = scalar_lea.sflag [#allocation5], 1
    %140 = vsyncpa %s139, 1

// kernel: soft_skeletonize.1
$region0: #{soft_skeletonize.1}
  #allocation0 [shape = 'u32[]', space=smem, size = 0x4, offset = 0x4, fixed_abs, tag = 'smem constant byte address 0x4 - core index']
  #allocation1 [shape = 'u32[144,128]{1,0:T(1,128)}', space=vmem, size = 0x12000, scoped, tag = 'internal scratch']
  #allocation2 [shape = 'f32[10,16,128]{2,1,0:T(8,128)}', space=vmem, size = 0x14000, scoped, tag = 'scratch operand']
  #allocation3 [shape = 'f32[10,16,128]{2,1,0:T(8,128)}', space=vmem, size = 0x14000, scoped, tag = 'scratch operand']
  #allocation4 [shape = 'f32[10,16,128]{2,1,0:T(8,128)}', space=vmem, size = 0x14000, scoped, tag = 'scratch operand']
  %s0 = inlined_call_operand.vmem [shape: f32[4,10,16,128], index: 0, kind: input, shape index: {}]
  %s1 = inlined_call_operand.vmem [shape: f32[4,10,16,128], index: 1, kind: output, shape index: {}]
  %s2 = sld [smem:[#allocation0]]
  $region100: #{soft_skeletonize.1} parent=0
    _
  %s4 = ssub.s32 1, %s2
  %s5 = scalar_select 0, %s4, %s2
  loop: start=0, step=1, limit=6
  $region2: #{soft_skeletonize.1} parent=0 // loop_pre_header
    _
  $region3: #{soft_skeletonize.1} parent=0 // loop_header
    %s7 = sphi 0, %s11
    %p8 = scmp.ge.s32.totalorder %s7, 6
    %s17 = sphi 0, %s19
    %s20 = sphi 0, %s17
    %s21 = sphi 0, %s20
    %s37 = sphi 0, %s21
    %s43 = sphi 0, %s45
    %s46 = sphi 0, %s43
    %s47 = sphi 0, %s46
    %s63 = sphi 0, %s47
  $region4: #{soft_skeletonize.1} parent=0 // loop_header_branch
    %10 = sbr.rel (%p8) target = $region8
  $region5: #{soft_skeletonize.1} parent=0 // loop_body
    %s12 = ssub.s32 %s7, 1
    %s13 = ssub.s32 %s7, 2
    %s14 = sadd.s32 %s7, 1
    %s15 = ssub.s32 %s7, %s14
    %p16 = scmp.eq.s32.totalorder %s15, 0
    %s18 = sadd.s32 %s17, 1
    %s19 = scalar_select %p16, %s17, %s18
    %p22 = pneg %p16
    %p23 = scmp.eq.s32.totalorder %s7, 3
    %p24 = por %p22, %p23
    %p25 = scmp.ne.s32.totalorder %s17, %s20
    %p26 = scmp.eq.s32.totalorder %s7, 0
    %p27 = por %p25, %p26
    %p28 = scmp.ne.s32.totalorder %s17, %s20
    %p29 = scmp.eq.s32.totalorder %s12, 3
    %p30 = por %p28, %p29
    %p31 = scmp.ne.s32.totalorder %s20, %s21
    %p32 = scmp.eq.s32.totalorder %s12, 0
    %p33 = por %p31, %p32
    %p34 = scmp.ne.s32.totalorder %s20, %s21
    %p35 = scmp.eq.s32.totalorder %s13, 3
    %p36 = por %p34, %p35
    %p38 = scmp.ne.s32.totalorder %s21, %s37
    %p39 = scmp.eq.s32.totalorder %s13, 0
    %p40 = por %p38, %p39
    %s41 = ssub.s32 %s7, %s14
    %p42 = scmp.eq.s32.totalorder %s41, 0
    %s44 = sadd.s32 %s43, 1
    %s45 = scalar_select %p42, %s43, %s44
    %p48 = pneg %p42
    %p49 = scmp.eq.s32.totalorder %s7, 3
    %p50 = por %p48, %p49
    %p51 = scmp.ne.s32.totalorder %s43, %s46
    %p52 = scmp.eq.s32.totalorder %s7, 0
    %p53 = por %p51, %p52
    %p54 = scmp.ne.s32.totalorder %s43, %s46
    %p55 = scmp.eq.s32.totalorder %s12, 3
    %p56 = por %p54, %p55
    %p57 = scmp.ne.s32.totalorder %s46, %s47
    %p58 = scmp.eq.s32.totalorder %s12, 0
    %p59 = por %p57, %p58
    %p60 = scmp.ne.s32.totalorder %s46, %s47
    %p61 = scmp.eq.s32.totalorder %s13, 3
    %p62 = por %p60, %p61
    %p64 = scmp.ne.s32.totalorder %s47, %s63
    %p65 = scmp.eq.s32.totalorder %s13, 0
    %p66 = por %p64, %p65
    %p67 = scmp.le.s32.totalorder 1, %s7
    %p68 = scmp.lt.s32.totalorder %s7, 5
    %p69 = pnand %p67, %p68
    %p70 = pneg %p69
    // Predicated region
    $region9: #{soft_skeletonize.1} parent=5 // pred_check
      _
    $region10: #{soft_skeletonize.1} parent=5 // pred_check_branch
      %72 = sbr.rel (%p69) target = $region12
    $region11: #{soft_skeletonize.1} parent=5 // pred_region
      %s73 = ssub.s32 %s7, 1
    $region12: #{soft_skeletonize.1} parent=5 // pred_fallthru
      _
    %p74 = scmp.lt.s32.totalorder %s7, 4
    // Predicated region
    $region13: #{soft_skeletonize.1} parent=5 // pred_check
      %p75 = pneg %p74
    $region14: #{soft_skeletonize.1} parent=5 // pred_check_branch
      %77 = sbr.rel (%p75) target = $region16
    $region15: #{soft_skeletonize.1} parent=5 // pred_region
      // Predicated region
      $region17: #{soft_skeletonize.1} parent=15 // pred_check
        %p78 = pneg %p27
      $region18: #{soft_skeletonize.1} parent=15 // pred_check_branch
        %80 = sbr.rel (%p78) target = $region20
      $region19: #{soft_skeletonize.1} parent=15 // pred_region
        %p81 = scmp.lt.s32.totalorder %s7, 3
        %s82 = scalar_select %p81, %s7, 3
        %s83 = smul.addr %s82, 20
        %s84 = smul.addr %s83, 8
        %s85 = scalar_lea.vmem %s0, %s84
      $region20: #{soft_skeletonize.1} parent=15 // pred_fallthru
        _
    $region16: #{soft_skeletonize.1} parent=5 // pred_fallthru
      _
    %p86 = scmp.le.s32.totalorder 1, %s7
    %p87 = scmp.lt.s32.totalorder %s7, 5
    %p88 = pnand %p86, %p87
    %p89 = pneg %p88
    // Predicated region
    $region21: #{soft_skeletonize.1} parent=5 // pred_check
      _
    $region22: #{soft_skeletonize.1} parent=5 // pred_check_branch
      %91 = sbr.rel (%p88) target = $region24
    $region23: #{soft_skeletonize.1} parent=5 // pred_region
      %s92 = ssub.s32 %s7, 1
      %p93 = scmp.lt.s32.totalorder %s12, 3
      %s94 = scalar_select %p93, %s12, 3
      %s95 = smul.addr %s94, 20
      %s96 = smul.addr %s95, 8
      %s97 = scalar_lea.vmem %s0, %s96
      %p98 = pneg %p33
      %p99 = pneg %p30
      %p100 = pneg %p59
      %p101 = pneg %p56
      %p102 = scmp.lt.s32.totalorder %s12, 3
      %s103 = scalar_select %p102, %s12, 3
      %s104 = smul.addr %s103, 20
      %s105 = smul.addr %s104, 8
      %s106 = scalar_lea.vmem %s1, %s105
      %p107 = scmp.lt.s32.totalorder %s12, 3
      %s108 = scalar_select %p107, %s12, 3
      %s109 = smul.addr %s108, 20
      %s110 = smul.addr %s109, 8
      %s111 = scalar_lea.vmem %s0, %s110
      %p112 = scmp.lt.s32.totalorder %s12, 3
      %s113 = scalar_select %p112, %s12, 3
      %s114 = smul.addr %s113, 20
      %s115 = smul.addr %s114, 8
      %s116 = scalar_lea.vmem %s1, %s115
      %v117 = vlaneseq
      %v118 = vshrl.u32 %v117, 7
      %v119 = vadd.s32 %v118, 8
      %v120 = vlaneseq
      %v121 = vand.u32 %v120, 127
      %vm122 = vcmp.eq.s32.totalorder %v118, 11
      %vm123 = vcmp.eq.s32.totalorder %v119, 11
      %vm124 = vcmp.eq.s32.totalorder %v121, 15
      %125 = vst [vmem:[#allocation4] sm:$0xff] 0.0
      %126 = vst [vmem:[#allocation4 + $0x8] sm:$0xff] 0.0
      %127 = vst [vmem:[#allocation4 + $0x10] sm:$0xff] 0.0
      %128 = vst [vmem:[#allocation4 + $0x18] sm:$0xff] 0.0
      %129 = vst [vmem:[#allocation4 + $0x20] sm:$0xff] 0.0
      %130 = vst [vmem:[#allocation4 + $0x28] sm:$0xff] 0.0
      %131 = vst [vmem:[#allocation4 + $0x30] sm:$0xff] 0.0
      %132 = vst [vmem:[#allocation4 + $0x38] sm:$0xff] 0.0
      %133 = vst [vmem:[#allocation4 + $0x40] sm:$0xff] 0.0
      %134 = vst [vmem:[#allocation4 + $0x48] sm:$0xff] 0.0
      %135 = vst [vmem:[#allocation4 + $0x50] sm:$0xff] 0.0
      %136 = vst [vmem:[#allocation4 + $0x58] sm:$0xff] 0.0
      %137 = vst [vmem:[#allocation4 + $0x60] sm:$0xff] 0.0
      %138 = vst [vmem:[#allocation4 + $0x68] sm:$0xff] 0.0
      %139 = vst [vmem:[#allocation4 + $0x70] sm:$0xff] 0.0
      %140 = vst [vmem:[#allocation4 + $0x78] sm:$0xff] 0.0
      %141 = vst [vmem:[#allocation4 + $0x80] sm:$0xff] 0.0
      %142 = vst [vmem:[#allocation4 + $0x88] sm:$0xff] 0.0
      %143 = vst [vmem:[#allocation4 + $0x90] sm:$0xff] 0.0
      %144 = vst [vmem:[#allocation4 + $0x98] sm:$0xff] 0.0
      loop: start=0, step=1, limit=10
      $region25: #{soft_skeletonize.1} parent=23 // loop_pre_header
        _
      $region26: #{soft_skeletonize.1} parent=23 // loop_header
        %s146 = sphi 0, %s150
        %p147 = scmp.ge.s32.totalorder %s146, 10
      $region27: #{soft_skeletonize.1} parent=23 // loop_header_branch
        %149 = sbr.rel (%p147) target = $region31
      $region28: #{soft_skeletonize.1} parent=23 // loop_body
        %s151 = smul.u32 %s146, 16
        %s152 = scalar_lea.vmem %s111, %s151
        %v153 = vld [vmem:[%s152] sm:$0xff]
        %v154 = vld [vmem:[%s152 + $0x8] sm:$0xff]
        %s155 = scalar_lea.vmem [#allocation2], %s151
        %156 = vst [vmem:[%s155] sm:$0xff] %v153
        %157 = vst [vmem:[%s155 + $0x8] sm:$0xff] %v154
      $region29: #{soft_skeletonize.1} parent=23 // loop_footer
        %s150 = sadd.s32 1, %s146
      $region30: #{soft_skeletonize.1} parent=23 // loop_footer_branch
        %145 = sbr.rel target = $region26
      $region31: #{soft_skeletonize.1} parent=23 // loop_exit
        _
      loop: start=0, step=1, limit=20
      $region32: #{soft_skeletonize.1} parent=23 // loop_pre_header
        _
      $region33: #{soft_skeletonize.1} parent=23 // loop_header
        %s159 = sphi 0, %s163
        %p160 = scmp.ge.s32.totalorder %s159, 20
      $region34: #{soft_skeletonize.1} parent=23 // loop_header_branch
        %162 = sbr.rel (%p160) target = $region38
      $region35: #{soft_skeletonize.1} parent=23 // loop_body
        loop: start=0, step=1, limit=10
        $region39: #{soft_skeletonize.1} parent=35 // loop_pre_header
          _
        $region40: #{soft_skeletonize.1} parent=35 // loop_header
          %s165 = sphi 0, %s169
          %p166 = scmp.ge.s32.totalorder %s165, 10
        $region41: #{soft_skeletonize.1} parent=35 // loop_header_branch
          %168 = sbr.rel (%p166) target = $region45
        $region42: #{soft_skeletonize.1} parent=35 // loop_body
          %s170 = ssub.s32 %s165, 1
          %p171 = scmp.gt.s32.totalorder %s170, 0
          %s172 = scalar_select %p171, %s170, 0
          %s173 = sadd.s32 %s165, 1
          %p174 = scmp.lt.s32.totalorder %s173, 9
          %s175 = scalar_select %p174, %s173, 9
          %s176 = smul.u32 %s165, 16
          %s177 = scalar_lea.vmem [#allocation2], %s176
          %v178 = vld [vmem:[%s177] sm:$0xff]
          %v179 = vld [vmem:[%s177 + $0x8] sm:$0xff]
          %s180 = smul.u32 %s172, 16
          %s181 = scalar_lea.vmem [#allocation2], %s180
          %v182 = vld [vmem:[%s181] sm:$0xff]
          %v183 = vld [vmem:[%s181 + $0x8] sm:$0xff]
          %v184 = vmin.f32 %v182, %v178
          %v185 = vmin.f32 %v183, %v179
          %s186 = smul.u32 %s175, 16
          %s187 = scalar_lea.vmem [#allocation2], %s186
          %v188 = vld [vmem:[%s187] sm:$0xff]
          %v189 = vld [vmem:[%s187 + $0x8] sm:$0xff]
          %v190 = vmin.f32 %v184, %v188
          %v191 = vmin.f32 %v185, %v189
          %vm194 = vcmask 1040384
          %v195 = vrot.slane %v178, 7
          %v196 = vrot.slane %v179, 7
          %v197 = vsel %vm194, %v195, %v196
          %v200 = vsel %vm194, %v178, %v195
          %vm201 = vcmask 1046528
          %v202 = vrot.slane %v178, 1
          %v203 = vrot.slane %v179, 1
          %v204 = vsel %vm201, %v202, %v203
          %v207 = vsel %vm201, %v203, %v179
          %v208 = vsel %vm122, %v178, %v204
          %v209 = vsel %vm123, %v179, %v207
          %v210 = vmin.f32 %v200, %v178
          %v211 = vmin.f32 %v197, %v179
          %v212 = vmin.f32 %v210, %v208
          %v213 = vmin.f32 %v211, %v209
          %v214 = vmin.f32 %v190, %v212
          %v215 = vmin.f32 %v191, %v213
          %216 = vrot.lane.b32.xlu0 %v178, 1
          %v217 = vpop.permute.xlu0 %216
          %218 = vrot.lane.b32.xlu0 %v179, 1
          %v219 = vpop.permute.xlu0 %218
          %vm222 = vcmask 7168
          %v223 = vsel %vm222, %v178, %v217
          %v224 = vsel %vm222, %v179, %v219
          %225 = vrot.lane.b32.xlu0 %v178, 127
          %v226 = vpop.permute.xlu0 %225
          %227 = vrot.lane.b32.xlu0 %v179, 127
          %v228 = vpop.permute.xlu0 %227
          %vm231 = vcmask 1039360
          %v232 = vsel %vm231, %v226, %v178
          %v233 = vsel %vm231, %v228, %v179
          %v234 = vsel %vm124, %v178, %v232
          %v235 = vsel %vm124, %v179, %v233
          %v236 = vmin.f32 %v223, %v178
          %v237 = vmin.f32 %v224, %v179
          %v238 = vmin.f32 %v236, %v234
          %v239 = vmin.f32 %v237, %v235
          %v240 = vmin.f32 %v214, %v238
          %v241 = vmin.f32 %v215, %v239
          %s242 = scalar_lea.vmem [#allocation3], %s176
          %243 = vst [vmem:[%s242] sm:$0xff] %v240
          %244 = vst [vmem:[%s242 + $0x8] sm:$0xff] %v241
        $region43: #{soft_skeletonize.1} parent=35 // loop_footer
          %s169 = sadd.s32 1, %s165
        $region44: #{soft_skeletonize.1} parent=35 // loop_footer_branch
          %164 = sbr.rel target = $region40
        $region45: #{soft_skeletonize.1} parent=35 // loop_exit
          _
        loop: start=0, step=1, limit=10
        $region46: #{soft_skeletonize.1} parent=35 // loop_pre_header
          _
        $region47: #{soft_skeletonize.1} parent=35 // loop_header
          %s246 = sphi 0, %s250
          %p247 = scmp.ge.s32.totalorder %s246, 10
        $region48: #{soft_skeletonize.1} parent=35 // loop_header_branch
          %249 = sbr.rel (%p247) target = $region52
        $region49: #{soft_skeletonize.1} parent=35 // loop_body
          %s251 = ssub.s32 %s246, 1
          %p252 = scmp.gt.s32.totalorder %s251, 0
          %s253 = scalar_select %p252, %s251, 0
          %s254 = sadd.s32 %s246, 1
          %p255 = scmp.lt.s32.totalorder %s254, 9
          %s256 = scalar_select %p255, %s254, 9
          %s257 = smul.u32 %s253, 16
          %s258 = scalar_lea.vmem [#allocation3], %s257
          %v259 = vld [vmem:[%s258] sm:$0xff]
          %v260 = vld [vmem:[%s258 + $0x8] sm:$0xff]
          %s261 = smul.u32 %s246, 16
          %s262 = scalar_lea.vmem [#allocation3], %s261
          %v263 = vld [vmem:[%s262] sm:$0xff]
          %v264 = vld [vmem:[%s262 + $0x8] sm:$0xff]
          %v265 = vmax.f32 %v259, %v263
          %v266 = vmax.f32 %v260, %v264
          %s267 = smul.u32 %s256, 16
          %s268 = scalar_lea.vmem [#allocation3], %s267
          %v269 = vld [vmem:[%s268] sm:$0xff]
          %v270 = vld [vmem:[%s268 + $0x8] sm:$0xff]
          %v271 = vmax.f32 %v265, %v269
          %v272 = vmax.f32 %v266, %v270
          %vm275 = vcmask 1040384
          %v276 = vrot.slane %v271, 7
          %v277 = vrot.slane %v272, 7
          %v278 = vsel %vm275, %v276, %v277
          %v281 = vsel %vm275, %v271, %v276
          %vm282 = vcmask 1046528
          %v283 = vrot.slane %v271, 1
          %v284 = vrot.slane %v272, 1
          %v285 = vsel %vm282, %v283, %v284
          %v288 = vsel %vm282, %v284, %v272
          %v289 = vsel %vm122, %v271, %v285
          %v290 = vsel %vm123, %v272, %v288
          %v291 = vmax.f32 %v281, %v271
          %v292 = vmax.f32 %v278, %v272
          %v293 = vmax.f32 %v291, %v289
          %v294 = vmax.f32 %v292, %v290
          %297 = vrot.lane.b32.xlu0 %v293, 1
          %v298 = vpop.permute.xlu0 %297
          %299 = vrot.lane.b32.xlu0 %v294, 1
          %v300 = vpop.permute.xlu0 %299
          %vm303 = vcmask 7168
          %v304 = vsel %vm303, %v293, %v298
          %v305 = vsel %vm303, %v294, %v300
          %306 = vrot.lane.b32.xlu0 %v293, 127
          %v307 = vpop.permute.xlu0 %306
          %308 = vrot.lane.b32.xlu0 %v294, 127
          %v309 = vpop.permute.xlu0 %308
          %vm312 = vcmask 1039360
          %v313 = vsel %vm312, %v307, %v293
          %v314 = vsel %vm312, %v309, %v294
          %v315 = vsel %vm124, %v293, %v313
          %v316 = vsel %vm124, %v294, %v314
          %v317 = vmax.f32 %v304, %v293
          %v318 = vmax.f32 %v305, %v294
          %v319 = vmax.f32 %v317, %v315
          %v320 = vmax.f32 %v318, %v316
          %s321 = scalar_lea.vmem [#allocation2], %s261
          %v322 = vld [vmem:[%s321] sm:$0xff]
          %v323 = vld [vmem:[%s321 + $0x8] sm:$0xff]
          %v324 = vsub.f32 %v322, %v319
          %v325 = vsub.f32 %v323, %v320
          %v326 = vmax.f32 %v324, 0.0
          %v327 = vmax.f32 %v325, 0.0
          %s328 = scalar_lea.vmem [#allocation4], %s261
          %v329 = vld [vmem:[%s328] sm:$0xff]
          %v330 = vld [vmem:[%s328 + $0x8] sm:$0xff]
          %v331 = vmul.f32 %v329, %v326
          %v332 = vmul.f32 %v330, %v327
          %v333 = vsub.f32 %v326, %v331
          %v334 = vsub.f32 %v327, %v332
          %v335 = vmax.f32 %v333, 0.0
          %v336 = vmax.f32 %v334, 0.0
          %v337 = vadd.f32 %v329, %v335
          %v338 = vadd.f32 %v330, %v336
          %339 = vst [vmem:[%s328] sm:$0xff] %v337
          %340 = vst [vmem:[%s328 + $0x8] sm:$0xff] %v338
        $region50: #{soft_skeletonize.1} parent=35 // loop_footer
          %s250 = sadd.s32 1, %s246
        $region51: #{soft_skeletonize.1} parent=35 // loop_footer_branch
          %245 = sbr.rel target = $region47
        $region52: #{soft_skeletonize.1} parent=35 // loop_exit
          _
        loop: start=0, step=1, limit=10
        $region53: #{soft_skeletonize.1} parent=35 // loop_pre_header
          _
        $region54: #{soft_skeletonize.1} parent=35 // loop_header
          %s342 = sphi 0, %s346
          %p343 = scmp.ge.s32.totalorder %s342, 10
        $region55: #{soft_skeletonize.1} parent=35 // loop_header_branch
          %345 = sbr.rel (%p343) target = $region59
        $region56: #{soft_skeletonize.1} parent=35 // loop_body
          %s347 = ssub.s32 %s342, 1
          %p348 = scmp.gt.s32.totalorder %s347, 0
          %s349 = scalar_select %p348, %s347, 0
          %s350 = sadd.s32 %s342, 1
          %p351 = scmp.lt.s32.totalorder %s350, 9
          %s352 = scalar_select %p351, %s350, 9
          %s353 = smul.u32 %s342, 16
          %s354 = scalar_lea.vmem [#allocation3], %s353
          %v355 = vld [vmem:[%s354] sm:$0xff]
          %v356 = vld [vmem:[%s354 + $0x8] sm:$0xff]
          %s357 = smul.u32 %s349, 16
          %s358 = scalar_lea.vmem [#allocation3], %s357
          %v359 = vld [vmem:[%s358] sm:$0xff]
          %v360 = vld [vmem:[%s358 + $0x8] sm:$0xff]
          %v361 = vmin.f32 %v359, %v355
          %v362 = vmin.f32 %v360, %v356
          %s363 = smul.u32 %s352, 16
          %s364 = scalar_lea.vmem [#allocation3], %s363
          %v365 = vld [vmem:[%s364] sm:$0xff]
          %v366 = vld [vmem:[%s364 + $0x8] sm:$0xff]
          %v367 = vmin.f32 %v361, %v365
          %v368 = vmin.f32 %v362, %v366
          %vm371 = vcmask 1040384
          %v372 = vrot.slane %v355, 7
          %v373 = vrot.slane %v356, 7
          %v374 = vsel %vm371, %v372, %v373
          %v377 = vsel %vm371, %v355, %v372
          %vm378 = vcmask 1046528
          %v379 = vrot.slane %v355, 1
          %v380 = vrot.slane %v356, 1
          %v381 = vsel %vm378, %v379, %v380
          %v384 = vsel %vm378, %v380, %v356
          %v385 = vsel %vm122, %v355, %v381
          %v386 = vsel %vm123, %v356, %v384
          %v387 = vmin.f32 %v377, %v355
          %v388 = vmin.f32 %v374, %v356
          %v389 = vmin.f32 %v387, %v385
          %v390 = vmin.f32 %v388, %v386
          %v391 = vmin.f32 %v367, %v389
          %v392 = vmin.f32 %v368, %v390
          %393 = vrot.lane.b32.xlu0 %v355, 1
          %v394 = vpop.permute.xlu0 %393
          %395 = vrot.lane.b32.xlu0 %v356, 1
          %v396 = vpop.permute.xlu0 %395
          %vm399 = vcmask 7168
          %v400 = vsel %vm399, %v355, %v394
          %v401 = vsel %vm399, %v356, %v396
          %402 = vrot.lane.b32.xlu0 %v355, 127
          %v403 = vpop.permute.xlu0 %402
          %404 = vrot.lane.b32.xlu0 %v356, 127
          %v405 = vpop.permute.xlu0 %404
          %vm408 = vcmask 1039360
          %v409 = vsel %vm408, %v403, %v355
          %v410 = vsel %vm408, %v405, %v356
          %v411 = vsel %vm124, %v355, %v409
          %v412 = vsel %vm124, %v356, %v410
          %v413 = vmin.f32 %v400, %v355
          %v414 = vmin.f32 %v401, %v356
          %v415 = vmin.f32 %v413, %v411
          %v416 = vmin.f32 %v414, %v412
          %v417 = vmin.f32 %v391, %v415
          %v418 = vmin.f32 %v392, %v416
          %s419 = scalar_lea.vmem [#allocation2], %s353
          %420 = vst [vmem:[%s419] sm:$0xff] %v417
          %421 = vst [vmem:[%s419 + $0x8] sm:$0xff] %v418
        $region57: #{soft_skeletonize.1} parent=35 // loop_footer
          %s346 = sadd.s32 1, %s342
        $region58: #{soft_skeletonize.1} parent=35 // loop_footer_branch
          %341 = sbr.rel target = $region54
        $region59: #{soft_skeletonize.1} parent=35 // loop_exit
          _
        loop: start=0, step=1, limit=10
        $region60: #{soft_skeletonize.1} parent=35 // loop_pre_header
          _
        $region61: #{soft_skeletonize.1} parent=35 // loop_header
          %s423 = sphi 0, %s427
          %p424 = scmp.ge.s32.totalorder %s423, 10
        $region62: #{soft_skeletonize.1} parent=35 // loop_header_branch
          %426 = sbr.rel (%p424) target = $region66
        $region63: #{soft_skeletonize.1} parent=35 // loop_body
          %s428 = ssub.s32 %s423, 1
          %p429 = scmp.gt.s32.totalorder %s428, 0
          %s430 = scalar_select %p429, %s428, 0
          %s431 = sadd.s32 %s423, 1
          %p432 = scmp.lt.s32.totalorder %s431, 9
          %s433 = scalar_select %p432, %s431, 9
          %s434 = smul.u32 %s430, 16
          %s435 = scalar_lea.vmem [#allocation2], %s434
          %v436 = vld [vmem:[%s435] sm:$0xff]
          %v437 = vld [vmem:[%s435 + $0x8] sm:$0xff]
          %s438 = smul.u32 %s423, 16
          %s439 = scalar_lea.vmem [#allocation2], %s438
          %v440 = vld [vmem:[%s439] sm:$0xff]
          %v441 = vld [vmem:[%s439 + $0x8] sm:$0xff]
          %v442 = vmax.f32 %v436, %v440
          %v443 = vmax.f32 %v437, %v441
          %s444 = smul.u32 %s433, 16
          %s445 = scalar_lea.vmem [#allocation2], %s444
          %v446 = vld [vmem:[%s445] sm:$0xff]
          %v447 = vld [vmem:[%s445 + $0x8] sm:$0xff]
          %v448 = vmax.f32 %v442, %v446
          %v449 = vmax.f32 %v443, %v447
          %vm452 = vcmask 1040384
          %v453 = vrot.slane %v448, 7
          %v454 = vrot.slane %v449, 7
          %v455 = vsel %vm452, %v453, %v454
          %v458 = vsel %vm452, %v448, %v453
          %vm459 = vcmask 1046528
          %v460 = vrot.slane %v448, 1
          %v461 = vrot.slane %v449, 1
          %v462 = vsel %vm459, %v460, %v461
          %v465 = vsel %vm459, %v461, %v449
          %v466 = vsel %vm122, %v448, %v462
          %v467 = vsel %vm123, %v449, %v465
          %v468 = vmax.f32 %v458, %v448
          %v469 = vmax.f32 %v455, %v449
          %v470 = vmax.f32 %v468, %v466
          %v471 = vmax.f32 %v469, %v467
          %474 = vrot.lane.b32.xlu0 %v470, 1
          %v475 = vpop.permute.xlu0 %474
          %476 = vrot.lane.b32.xlu0 %v471, 1
          %v477 = vpop.permute.xlu0 %476
          %vm480 = vcmask 7168
          %v481 = vsel %vm480, %v470, %v475
          %v482 = vsel %vm480, %v471, %v477
          %483 = vrot.lane.b32.xlu0 %v470, 127
          %v484 = vpop.permute.xlu0 %483
          %485 = vrot.lane.b32.xlu0 %v471, 127
          %v486 = vpop.permute.xlu0 %485
          %vm489 = vcmask 1039360
          %v490 = vsel %vm489, %v484, %v470
          %v491 = vsel %vm489, %v486, %v471
          %v492 = vsel %vm124, %v470, %v490
          %v493 = vsel %vm124, %v471, %v491
          %v494 = vmax.f32 %v481, %v470
          %v495 = vmax.f32 %v482, %v471
          %v496 = vmax.f32 %v494, %v492
          %v497 = vmax.f32 %v495, %v493
          %s498 = scalar_lea.vmem [#allocation3], %s438
          %v499 = vld [vmem:[%s498] sm:$0xff]
          %v500 = vld [vmem:[%s498 + $0x8] sm:$0xff]
          %v501 = vsub.f32 %v499, %v496
          %v502 = vsub.f32 %v500, %v497
          %v503 = vmax.f32 %v501, 0.0
          %v504 = vmax.f32 %v502, 0.0
          %s505 = scalar_lea.vmem [#allocation4], %s438
          %v506 = vld [vmem:[%s505] sm:$0xff]
          %v507 = vld [vmem:[%s505 + $0x8] sm:$0xff]
          %v508 = vmul.f32 %v506, %v503
          %v509 = vmul.f32 %v507, %v504
          %v510 = vsub.f32 %v503, %v508
          %v511 = vsub.f32 %v504, %v509
          %v512 = vmax.f32 %v510, 0.0
          %v513 = vmax.f32 %v511, 0.0
          %v514 = vadd.f32 %v506, %v512
          %v515 = vadd.f32 %v507, %v513
          %516 = vst [vmem:[%s505] sm:$0xff] %v514
          %517 = vst [vmem:[%s505 + $0x8] sm:$0xff] %v515
        $region64: #{soft_skeletonize.1} parent=35 // loop_footer
          %s427 = sadd.s32 1, %s423
        $region65: #{soft_skeletonize.1} parent=35 // loop_footer_branch
          %422 = sbr.rel target = $region61
        $region66: #{soft_skeletonize.1} parent=35 // loop_exit
          _
      $region36: #{soft_skeletonize.1} parent=23 // loop_footer
        %s163 = sadd.s32 1, %s159
      $region37: #{soft_skeletonize.1} parent=23 // loop_footer_branch
        %158 = sbr.rel target = $region33
      $region38: #{soft_skeletonize.1} parent=23 // loop_exit
        _
      loop: start=0, step=1, limit=10
      $region67: #{soft_skeletonize.1} parent=23 // loop_pre_header
        _
      $region68: #{soft_skeletonize.1} parent=23 // loop_header
        %s519 = sphi 0, %s523
        %p520 = scmp.ge.s32.totalorder %s519, 10
      $region69: #{soft_skeletonize.1} parent=23 // loop_header_branch
        %522 = sbr.rel (%p520) target = $region73
      $region70: #{soft_skeletonize.1} parent=23 // loop_body
        %s524 = ssub.s32 %s519, 1
        %p525 = scmp.gt.s32.totalorder %s524, 0
        %s526 = scalar_select %p525, %s524, 0
        %s527 = sadd.s32 %s519, 1
        %p528 = scmp.lt.s32.totalorder %s527, 9
        %s529 = scalar_select %p528, %s527, 9
        %s530 = smul.u32 %s519, 16
        %s531 = scalar_lea.vmem [#allocation2], %s530
        %v532 = vld [vmem:[%s531] sm:$0xff]
        %v533 = vld [vmem:[%s531 + $0x8] sm:$0xff]
        %s534 = smul.u32 %s526, 16
        %s535 = scalar_lea.vmem [#allocation2], %s534
        %v536 = vld [vmem:[%s535] sm:$0xff]
        %v537 = vld [vmem:[%s535 + $0x8] sm:$0xff]
        %v538 = vmin.f32 %v536, %v532
        %v539 = vmin.f32 %v537, %v533
        %s540 = smul.u32 %s529, 16
        %s541 = scalar_lea.vmem [#allocation2], %s540
        %v542 = vld [vmem:[%s541] sm:$0xff]
        %v543 = vld [vmem:[%s541 + $0x8] sm:$0xff]
        %v544 = vmin.f32 %v538, %v542
        %v545 = vmin.f32 %v539, %v543
        %vm548 = vcmask 1040384
        %v549 = vrot.slane %v532, 7
        %v550 = vrot.slane %v533, 7
        %v551 = vsel %vm548, %v549, %v550
        %v554 = vsel %vm548, %v532, %v549
        %vm555 = vcmask 1046528
        %v556 = vrot.slane %v532, 1
        %v557 = vrot.slane %v533, 1
        %v558 = vsel %vm555, %v556, %v557
        %v561 = vsel %vm555, %v557, %v533
        %v562 = vsel %vm122, %v532, %v558
        %v563 = vsel %vm123, %v533, %v561
        %v564 = vmin.f32 %v554, %v532
        %v565 = vmin.f32 %v551, %v533
        %v566 = vmin.f32 %v564, %v562
        %v567 = vmin.f32 %v565, %v563
        %v568 = vmin.f32 %v544, %v566
        %v569 = vmin.f32 %v545, %v567
        %570 = vrot.lane.b32.xlu0 %v532, 1
        %v571 = vpop.permute.xlu0 %570
        %572 = vrot.lane.b32.xlu0 %v533, 1
        %v573 = vpop.permute.xlu0 %572
        %vm576 = vcmask 7168
        %v577 = vsel %vm576, %v532, %v571
        %v578 = vsel %vm576, %v533, %v573
        %579 = vrot.lane.b32.xlu0 %v532, 127
        %v580 = vpop.permute.xlu0 %579
        %581 = vrot.lane.b32.xlu0 %v533, 127
        %v582 = vpop.permute.xlu0 %581
        %vm585 = vcmask 1039360
        %v586 = vsel %vm585, %v580, %v532
        %v587 = vsel %vm585, %v582, %v533
        %v588 = vsel %vm124, %v532, %v586
        %v589 = vsel %vm124, %v533, %v587
        %v590 = vmin.f32 %v577, %v532
        %v591 = vmin.f32 %v578, %v533
        %v592 = vmin.f32 %v590, %v588
        %v593 = vmin.f32 %v591, %v589
        %v594 = vmin.f32 %v568, %v592
        %v595 = vmin.f32 %v569, %v593
        %s596 = scalar_lea.vmem [#allocation3], %s530
        %597 = vst [vmem:[%s596] sm:$0xff] %v594
        %598 = vst [vmem:[%s596 + $0x8] sm:$0xff] %v595
      $region71: #{soft_skeletonize.1} parent=23 // loop_footer
        %s523 = sadd.s32 1, %s519
      $region72: #{soft_skeletonize.1} parent=23 // loop_footer_branch
        %518 = sbr.rel target = $region68
      $region73: #{soft_skeletonize.1} parent=23 // loop_exit
        _
      loop: start=0, step=1, limit=10
      $region74: #{soft_skeletonize.1} parent=23 // loop_pre_header
        _
      $region75: #{soft_skeletonize.1} parent=23 // loop_header
        %s600 = sphi 0, %s604
        %p601 = scmp.ge.s32.totalorder %s600, 10
      $region76: #{soft_skeletonize.1} parent=23 // loop_header_branch
        %603 = sbr.rel (%p601) target = $region80
      $region77: #{soft_skeletonize.1} parent=23 // loop_body
        %s605 = ssub.s32 %s600, 1
        %p606 = scmp.gt.s32.totalorder %s605, 0
        %s607 = scalar_select %p606, %s605, 0
        %s608 = sadd.s32 %s600, 1
        %p609 = scmp.lt.s32.totalorder %s608, 9
        %s610 = scalar_select %p609, %s608, 9
        %s611 = smul.u32 %s607, 16
        %s612 = scalar_lea.vmem [#allocation3], %s611
        %v613 = vld [vmem:[%s612] sm:$0xff]
        %v614 = vld [vmem:[%s612 + $0x8] sm:$0xff]
        %s615 = smul.u32 %s600, 16
        %s616 = scalar_lea.vmem [#allocation3], %s615
        %v617 = vld [vmem:[%s616] sm:$0xff]
        %v618 = vld [vmem:[%s616 + $0x8] sm:$0xff]
        %v619 = vmax.f32 %v613, %v617
        %v620 = vmax.f32 %v614, %v618
        %s621 = smul.u32 %s610, 16
        %s622 = scalar_lea.vmem [#allocation3], %s621
        %v623 = vld [vmem:[%s622] sm:$0xff]
        %v624 = vld [vmem:[%s622 + $0x8] sm:$0xff]
        %v625 = vmax.f32 %v619, %v623
        %v626 = vmax.f32 %v620, %v624
        %vm629 = vcmask 1040384
        %v630 = vrot.slane %v625, 7
        %v631 = vrot.slane %v626, 7
        %v632 = vsel %vm629, %v630, %v631
        %v635 = vsel %vm629, %v625, %v630
        %vm636 = vcmask 1046528
        %v637 = vrot.slane %v625, 1
        %v638 = vrot.slane %v626, 1
        %v639 = vsel %vm636, %v637, %v638
        %v642 = vsel %vm636, %v638, %v626
        %v643 = vsel %vm122, %v625, %v639
        %v644 = vsel %vm123, %v626, %v642
        %v645 = vmax.f32 %v635, %v625
        %v646 = vmax.f32 %v632, %v626
        %v647 = vmax.f32 %v645, %v643
        %v648 = vmax.f32 %v646, %v644
        %651 = vrot.lane.b32.xlu0 %v647, 1
        %v652 = vpop.permute.xlu0 %651
        %653 = vrot.lane.b32.xlu0 %v648, 1
        %v654 = vpop.permute.xlu0 %653
        %vm657 = vcmask 7168
        %v658 = vsel %vm657, %v647, %v652
        %v659 = vsel %vm657, %v648, %v654
        %660 = vrot.lane.b32.xlu0 %v647, 127
        %v661 = vpop.permute.xlu0 %660
        %662 = vrot.lane.b32.xlu0 %v648, 127
        %v663 = vpop.permute.xlu0 %662
        %vm666 = vcmask 1039360
        %v667 = vsel %vm666, %v661, %v647
        %v668 = vsel %vm666, %v663, %v648
        %v669 = vsel %vm124, %v647, %v667
        %v670 = vsel %vm124, %v648, %v668
        %v671 = vmax.f32 %v658, %v647
        %v672 = vmax.f32 %v659, %v648
        %v673 = vmax.f32 %v671, %v669
        %v674 = vmax.f32 %v672, %v670
        %s675 = scalar_lea.vmem [#allocation2], %s615
        %v676 = vld [vmem:[%s675] sm:$0xff]
        %v677 = vld [vmem:[%s675 + $0x8] sm:$0xff]
        %v678 = vsub.f32 %v676, %v673
        %v679 = vsub.f32 %v677, %v674
        %v680 = vmax.f32 %v678, 0.0
        %v681 = vmax.f32 %v679, 0.0
        %s682 = scalar_lea.vmem [#allocation4], %s615
        %v683 = vld [vmem:[%s682] sm:$0xff]
        %v684 = vld [vmem:[%s682 + $0x8] sm:$0xff]
        %v685 = vmul.f32 %v683, %v680
        %v686 = vmul.f32 %v684, %v681
        %v687 = vsub.f32 %v680, %v685
        %v688 = vsub.f32 %v681, %v686
        %v689 = vmax.f32 %v687, 0.0
        %v690 = vmax.f32 %v688, 0.0
        %v691 = vadd.f32 %v683, %v689
        %v692 = vadd.f32 %v684, %v690
        %693 = vst [vmem:[%s682] sm:$0xff] %v691
        %694 = vst [vmem:[%s682 + $0x8] sm:$0xff] %v692
      $region78: #{soft_skeletonize.1} parent=23 // loop_footer
        %s604 = sadd.s32 1, %s600
      $region79: #{soft_skeletonize.1} parent=23 // loop_footer_branch
        %599 = sbr.rel target = $region75
      $region80: #{soft_skeletonize.1} parent=23 // loop_exit
        _
      loop: start=0, step=1, limit=10
      $region81: #{soft_skeletonize.1} parent=23 // loop_pre_header
        _
      $region82: #{soft_skeletonize.1} parent=23 // loop_header
        %s696 = sphi 0, %s700
        %p697 = scmp.ge.s32.totalorder %s696, 10
      $region83: #{soft_skeletonize.1} parent=23 // loop_header_branch
        %699 = sbr.rel (%p697) target = $region87
      $region84: #{soft_skeletonize.1} parent=23 // loop_body
        %s701 = smul.u32 %s696, 16
        %s702 = scalar_lea.vmem [#allocation4], %s701
        %v703 = vld [vmem:[%s702] sm:$0xff]
        %v704 = vld [vmem:[%s702 + $0x8] sm:$0xff]
        %s705 = scalar_lea.vmem %s116, %s701
        %706 = vst [vmem:[%s705] sm:$0xff] %v703
        %707 = vst [vmem:[%s705 + $0x8] sm:$0xff] %v704
      $region85: #{soft_skeletonize.1} parent=23 // loop_footer
        %s700 = sadd.s32 1, %s696
      $region86: #{soft_skeletonize.1} parent=23 // loop_footer_branch
        %695 = sbr.rel target = $region82
      $region87: #{soft_skeletonize.1} parent=23 // loop_exit
        _
      %p708 = scmp.lt.s32.totalorder %s12, 3
      %s709 = scalar_select %p708, %s12, 3
      %s710 = smul.addr %s709, 20
      %s711 = smul.addr %s710, 8
      %s712 = scalar_lea.vmem %s1, %s711
      // Predicated region
      $region88: #{soft_skeletonize.1} parent=23 // pred_check
        %p713 = pneg %p56
      $region89: #{soft_skeletonize.1} parent=23 // pred_check_branch
        %715 = sbr.rel (%p713) target = $region91
      $region90: #{soft_skeletonize.1} parent=23 // pred_region
        _
      $region91: #{soft_skeletonize.1} parent=23 // pred_fallthru
        _
    $region24: #{soft_skeletonize.1} parent=5 // pred_fallthru
      _
    %p716 = scmp.le.s32.totalorder 2, %s7
    // Predicated region
    $region92: #{soft_skeletonize.1} parent=5 // pred_check
      %p717 = pneg %p716
    $region93: #{soft_skeletonize.1} parent=5 // pred_check_branch
      %719 = sbr.rel (%p717) target = $region95
    $region94: #{soft_skeletonize.1} parent=5 // pred_region
      %s720 = ssub.s32 %s7, 2
      // Predicated region
      $region96: #{soft_skeletonize.1} parent=94 // pred_check
        %p721 = pneg %p62
      $region97: #{soft_skeletonize.1} parent=94 // pred_check_branch
        %723 = sbr.rel (%p721) target = $region99
      $region98: #{soft_skeletonize.1} parent=94 // pred_region
        %p724 = scmp.lt.s32.totalorder %s13, 3
        %s725 = scalar_select %p724, %s13, 3
        %s726 = smul.addr %s725, 20
        %s727 = smul.addr %s726, 8
        %s728 = scalar_lea.vmem %s1, %s727
      $region99: #{soft_skeletonize.1} parent=94 // pred_fallthru
        _
    $region95: #{soft_skeletonize.1} parent=5 // pred_fallthru
      _
  $region6: #{soft_skeletonize.1} parent=0 // loop_footer
    %s11 = sadd.s32 1, %s7
  $region7: #{soft_skeletonize.1} parent=0 // loop_footer_branch
    %6 = sbr.rel target = $region3
  $region8: #{soft_skeletonize.1} parent=0 // loop_exit
    _

</llo_original>
